<compile_context>
chip_gen: v5e
topology: v5e:2x2
jax: 0.10.0
libtpu: 0.0.40
codegen_flags: <defaults>
</compile_context>

<pallas_src>
import functools

import jax
import jax.numpy as jnp
from jax.experimental import pallas as pl
from jax.experimental.pallas import tpu as pltpu


# ----------------------------- tiling helpers ------------------------------

def _pick_tile(dim, target, aligns=(128, 8)):
    """Largest tile <= target that divides `dim`, preferring 128- then 8-alignment.

    Falls back to the full extent, which is always a legal Mosaic block size.
    # TODO(synk): for very large, non-divisible N on v7x (64 MiB VMEM), switch to a
    # pl.cdiv grid with explicit masking instead of the full-extent fallback.
    """
    if dim <= target:
        return dim
    for align in aligns:
        t = (target // align) * align
        while t >= align:
            if dim % t == 0:
                return t
            t -= align
    return dim


# ----------------------------- Pallas kernels ------------------------------

def _qkv_kernel(x_ref, w_ref, o_ref):
    # x: (tm, C) bf16, w: (C, C) bf16 [rows of one q/k/v chunk, PyTorch (out, in)],
    # o: (tm, C) bf16.  Full-K contraction, f32 accumulation on the MXU.
    o_ref[...] = jax.lax.dot_general(
        x_ref[...], w_ref[...],
        dimension_numbers=(((1,), (1,)), ((), ())),   # contract "in" axis; no W.T copy
        preferred_element_type=jnp.float32).astype(o_ref.dtype)


def _proj_kernel(x_ref, w_ref, b_ref, o_ref):
    # x: (tm, C) bf16, w: (C, C) bf16, b: (1, C) f32, o: (tm, C) f32.
    acc = jax.lax.dot_general(
        x_ref[...], w_ref[...],
        dimension_numbers=(((1,), (1,)), ((), ())),
        preferred_element_type=jnp.float32)
    o_ref[...] = (acc + b_ref[...]).astype(o_ref.dtype)


def _flash_attn_kernel(q_ref, k_ref, v_ref, o_ref, m_ref, l_ref, acc_ref,
                       *, num_heads, head_dim):
    # q: (tq, C) bf16, k/v: (tkv, C) bf16 — lane-dense tiles; heads are static slices.
    # Scratch (f32): m, l: (H, tq, 128) lane-replicated running max / sum,
    #                acc:  (H, tq, D)   head-major running output (lane-0 slabs).
    ki = pl.program_id(2)
    H, D = num_heads, head_dim

    @pl.when(ki == 0)
    def _():
        m_ref[...] = jnp.full(m_ref.shape, -jnp.inf, m_ref.dtype)
        l_ref[...] = jnp.zeros(l_ref.shape, l_ref.dtype)
        acc_ref[...] = jnp.zeros(acc_ref.shape, acc_ref.dtype)

    for h in range(H):                         # static unroll; H is small
        sl = slice(h * D, (h + 1) * D)
        qh = q_ref[:, sl]                      # (tq, D)  bf16; 1/sqrt(D) folded in W
        kh = k_ref[:, sl]                      # (tkv, D) bf16
        # scores: contract D of q and k directly (no explicit k.T); f32 accumulation
        s = jax.lax.dot_general(
            qh, kh,
            dimension_numbers=(((1,), (1,)), ((), ())),
            preferred_element_type=jnp.float32)            # (tq, tkv) f32

        m_prev = m_ref[h]                                  # (tq, 128) lane-replicated
        l_prev = l_ref[h]
        m_curr = jnp.max(s, axis=-1, keepdims=True)        # (tq, 1)
        m_next = jnp.maximum(m_prev, m_curr)               # (tq, 128) replicated
        alpha = jnp.exp(m_prev - m_next)                   # (tq, 128) replicated
        # NOTE: exp kept in f32 (v5e has no bf16 EUP; avoids online-softmax drift).
        p = jnp.exp(s - m_next[:, :1])                     # (tq, tkv) f32

        # full-block, lane-0 scratch stores (no masked single-lane vst)
        l_ref[h] = alpha * l_prev + jnp.sum(p, axis=-1, keepdims=True)
        m_ref[h] = m_next

        pv = jax.lax.dot_general(
            p.astype(v_ref.dtype), v_ref[:, sl],           # bf16 MXU operands
            dimension_numbers=(((1,), (0,)), ((), ())),
            preferred_element_type=jnp.float32)            # (tq, D) f32
        acc_ref[h] = acc_ref[h] * alpha[:, :1] + pv

    @pl.when(ki == pl.num_programs(2) - 1)
    def _():
        # TODO(synk): attention dropout omitted (identity in eval mode).
        for h in range(H):
            sl = slice(h * D, (h + 1) * D)
            inv_l = pl.reciprocal(l_ref[h][:, :1], approx=True)   # EUP vrcp
            o_ref[:, sl] = (acc_ref[h] * inv_l).astype(o_ref.dtype)


# ----------------------------- Pallas wrappers ------------------------------

def _pallas_qkv_proj(x2, w_qkv):
    """x2: (M, C) bf16, w_qkv: (3C, C) bf16 (PyTorch layout) -> (3, M, C) bf16."""
    M, C = x2.shape
    assert w_qkv.shape == (3 * C, C)
    tm = _pick_tile(M, 512)
    grid = (3, M // tm)            # chunk (q/k/v) outermost: (C, C) weight block
    return pl.pallas_call(         # stays resident across all row blocks of a chunk
        _qkv_kernel,
        out_shape=jax.ShapeDtypeStruct((3, M, C), jnp.bfloat16),
        grid_spec=pltpu.PrefetchScalarGridSpec(
            num_scalar_prefetch=0,
            grid=grid,
            in_specs=[
                pl.BlockSpec((tm, C), lambda j, i: (i, 0)),
                pl.BlockSpec((C, C), lambda j, i: (j, 0)),   # rows of chunk j (q/k/v)
            ],
            # write straight into (3, M, C): no q/k/v transpose in HBM afterwards
            out_specs=pl.BlockSpec((None, tm, C), lambda j, i: (j, i, 0)),
        ),
        compiler_params=pltpu.CompilerParams(
            dimension_semantics=("parallel", "parallel")),
    )(x2, w_qkv)


def _pallas_proj(x2, w, b):
    """x2: (M, C) bf16, w: (C, C) bf16 (PyTorch layout), b: (C,) f32 -> (M, C) f32."""
    M, C = x2.shape
    assert w.shape == (C, C)
    tm = _pick_tile(M, 512)
    b2 = b.reshape(1, C).astype(jnp.float32)
    return pl.pallas_call(
        _proj_kernel,
        out_shape=jax.ShapeDtypeStruct((M, C), jnp.float32),
        grid_spec=pltpu.PrefetchScalarGridSpec(
            num_scalar_prefetch=0,
            grid=(M // tm,),
            in_specs=[
                pl.BlockSpec((tm, C), lambda i: (i, 0)),
                pl.BlockSpec((C, C), lambda i: (0, 0)),      # whole W resident
                pl.BlockSpec((1, C), lambda i: (0, 0)),
            ],
            out_specs=pl.BlockSpec((tm, C), lambda i: (i, 0)),
        ),
        compiler_params=pltpu.CompilerParams(
            dimension_semantics=("parallel",)),
    )(x2, w, b2)


def _pallas_flash_attention(qkv3, num_heads):
    """qkv3: (3, B, N, C) bf16 chunk-major q/k/v -> (B, N, C) bf16 attention output."""
    _, B, N, C = qkv3.shape
    D = C // num_heads
    # 128-aligned tiles; live (tq, tkv) f32 score tile <= 128 KiB (vreg-file sized).
    tq = _pick_tile(N, 128)
    tkv = _pick_tile(N, 256)
    grid = (B, N // tq, N // tkv)          # KV reduction axis last ("arbitrary")

    q_spec = pl.BlockSpec((None, None, tq, C), lambda b, qi, ki: (0, b, qi, 0))
    # TODO(synk): if xprof shows exposed KV DMA, add pipeline_mode=pl.Buffered(3) here.
    k_spec = pl.BlockSpec((None, None, tkv, C), lambda b, qi, ki: (1, b, ki, 0))
    v_spec = pl.BlockSpec((None, None, tkv, C), lambda b, qi, ki: (2, b, ki, 0))
    o_spec = pl.BlockSpec((None, tq, C), lambda b, qi, ki: (b, qi, 0))   # lane-dense

    return pl.pallas_call(
        functools.partial(_flash_attn_kernel, num_heads=num_heads, head_dim=D),
        out_shape=jax.ShapeDtypeStruct((B, N, C), jnp.bfloat16),
        grid_spec=pltpu.PrefetchScalarGridSpec(
            num_scalar_prefetch=0,
            grid=grid,
            in_specs=[q_spec, k_spec, v_spec],
            out_specs=o_spec,
            scratch_shapes=[
                pltpu.VMEM((num_heads, tq, 128), jnp.float32),  # running max (replicated)
                pltpu.VMEM((num_heads, tq, 128), jnp.float32),  # running sum (replicated)
                pltpu.VMEM((num_heads, tq, D), jnp.float32),    # running output (head-major)
            ],
        ),
        compiler_params=pltpu.CompilerParams(
            dimension_semantics=("parallel", "parallel", "arbitrary")),
    )(qkv3, qkv3, qkv3)


def attention_forward(x, params, num_heads):
    """Pallas implementation of Attention.forward.

    x: (B, N, C) float32
    params: dict with
      w_qkv: (3C, C)   (PyTorch Linear weight, bias=False)
      w_proj: (C, C)   (PyTorch Linear weight)
      b_proj: (C,)     (PyTorch Linear bias)
    """
    B, N, C = x.shape
    H = num_heads
    assert C % H == 0
    D = C // H
    scale = float(D) ** (-0.5)

    # Fold the 1/sqrt(D) scale into the q rows of the qkv weight (one tiny op on
    # the (3C, C) weight instead of a per-grid-step VPU pass over the q tiles),
    # then cast the MXU operands to bf16 (accumulation stays f32 in-kernel).
    w_qkv = params["w_qkv"].astype(jnp.float32)
    row_scale = jnp.concatenate(
        [jnp.full((C, 1), scale, jnp.float32), jnp.ones((2 * C, 1), jnp.float32)],
        axis=0)
    w_qkv_bf16 = (w_qkv * row_scale).astype(jnp.bfloat16)
    w_proj_bf16 = params["w_proj"].astype(jnp.bfloat16)

    # --- qkv = Linear(C, 3C, bias=False), chunk-resident weight, chunk-major output ---
    x2 = x.reshape(B * N, C).astype(jnp.bfloat16)
    qkv3 = _pallas_qkv_proj(x2, w_qkv_bf16)          # (3, B*N, C) bf16
    qkv3 = qkv3.reshape(3, B, N, C)                  # metadata-only reshape

    # --- flash-style attention, per-(b, q-block) with KV reduction axis ---
    o = _pallas_flash_attention(qkv3, H)             # (B, N, C) bf16, lane-dense

    # --- output projection (Linear with bias), whole weight resident ---
    y = _pallas_proj(o.reshape(B * N, C), w_proj_bf16, params["b_proj"])
    # TODO(synk): projection dropout omitted (identity in eval mode).
    return y.reshape(B, N, C)


# ----------------------------- reference (pure JAX, f32) ---------------------

def attention_reference(x, params, num_heads):
    B, N, C = x.shape
    H = num_heads
    D = C // H
    scale = float(D) ** (-0.5)
    qkv = x @ params["w_qkv"].T                           # (B, N, 3C)
    qkv = qkv.reshape(B, N, 3, H, D)
    q = jnp.transpose(qkv[:, :, 0], (0, 2, 1, 3)) * scale
    k = jnp.transpose(qkv[:, :, 1], (0, 2, 1, 3))
    v = jnp.transpose(qkv[:, :, 2], (0, 2, 1, 3))
    attn = jnp.einsum("bhid,bhjd->bhij", q, k)
    attn = jax.nn.softmax(attn, axis=-1)
    o = jnp.einsum("bhij,bhjd->bhid", attn, v)
    o = jnp.transpose(o, (0, 2, 1, 3)).reshape(B, N, C)
    return o @ params["w_proj"].T + params["b_proj"]


# ----------------------------- main ------------------------------

if __name__ == "__main__":
    B, N, C = 2, 8, 32
    num_heads = 4

    key = jax.random.PRNGKey(0)
    kx, kq, kp, kb = jax.random.split(key, 4)

    x = jax.random.normal(kx, (B, N, C), dtype=jnp.float32)
    params = {
        "w_qkv": jax.random.normal(kq, (3 * C, C), dtype=jnp.float32) * 0.05,
        "w_proj": jax.random.normal(kp, (C, C), dtype=jnp.float32) * 0.05,
        "b_proj": jax.random.normal(kb, (C,), dtype=jnp.float32) * 0.05,
    }

    fwd = jax.jit(attention_forward, static_argnums=2)
    out = jax.block_until_ready(fwd(x, params, num_heads))

    ref = attention_reference(x, params, num_heads)
    assert out.shape == (B, N, C)
    assert out.dtype == jnp.float32
    # Tolerance accounts for bf16 MXU operands (f32 accumulation) and the approximate
    # EUP reciprocal in the softmax normalization; estimated error is well below this.
    assert jnp.allclose(out, ref, atol=2e-2, rtol=2e-2), "mismatch vs reference"

    print("KERNEL_OK")
</pallas_src>

<mosaic_0001>
module attributes {stable_mosaic.version = 11 : i64} {
  func.func @_qkv_kernel(%arg0: i32, %arg1: i32, %arg2: memref<16x32xbf16, #tpu.memory_space<vmem>>, %arg3: memref<32x32xbf16, #tpu.memory_space<vmem>>, %arg4: memref<1x16x32xbf16, #tpu.memory_space<vmem>>) attributes {dimension_semantics = [#tpu.dimension_semantics<parallel>, #tpu.dimension_semantics<parallel>], iteration_bounds = array<i64: 3, 1>, scalar_prefetch = 0 : i64, scratch_operands = 0 : i64, tpu.core_type = #tpu.core_type<tc>, window_params = [{transform_indices = @transform_0, window_bounds = array<i64: 16, 32>}, {transform_indices = @transform_1, window_bounds = array<i64: 32, 32>}, {transform_indices = @transform_2, window_bounds = array<i64: 1, 16, 32>}]} {
    %c0 = arith.constant 0 : index
    %c0_0 = arith.constant 0 : index
    %0 = vector.load %arg2[%c0, %c0_0] : memref<16x32xbf16, #tpu.memory_space<vmem>>, vector<16x32xbf16>
    %c0_1 = arith.constant 0 : index
    %c0_2 = arith.constant 0 : index
    %1 = vector.load %arg3[%c0_1, %c0_2] : memref<32x32xbf16, #tpu.memory_space<vmem>>, vector<32x32xbf16>
    %cst = arith.constant dense<0.000000e+00> : vector<16x32xf32>
    %2 = tpu.matmul %0, %1, %cst {dimension_numbers = #tpu.dot_dimension_numbers<[1], [1], [0], [0], [0, 0, 1, 0], [], []>} : vector<16x32xbf16>, vector<32x32xbf16>, vector<16x32xf32> -> vector<16x32xf32>
    %3 = arith.truncf %2 : vector<16x32xf32> to vector<16x32xbf16>
    %c0_3 = arith.constant 0 : index
    %c0_4 = arith.constant 0 : index
    %c0_5 = arith.constant 0 : index
    %4 = vector.load %arg4[%c0_3, %c0_4, %c0_5] : memref<1x16x32xbf16, #tpu.memory_space<vmem>>, vector<1x16x32xbf16>
    %5 = vector.shape_cast %4 : vector<1x16x32xbf16> to vector<16x32xbf16>
    %6 = vector.shape_cast %3 : vector<16x32xbf16> to vector<1x16x32xbf16>
    tpu.vector_store %arg4[%c0_3, %c0_4, %c0_5], %6 {strides = array<i32>} : memref<1x16x32xbf16, #tpu.memory_space<vmem>>, vector<1x16x32xbf16>,
    return
  }
  func.func @transform_0(%arg0: i32, %arg1: i32) -> (i32, i32) {
    %c0_i32 = arith.constant 0 : i32
    %c0_i32_0 = arith.constant 0 : i32
    return %arg1, %c0_i32 : i32, i32
  }
  func.func @transform_1(%arg0: i32, %arg1: i32) -> (i32, i32) {
    %c0_i32 = arith.constant 0 : i32
    %c0_i32_0 = arith.constant 0 : i32
    return %arg0, %c0_i32 : i32, i32
  }
  func.func @transform_2(%arg0: i32, %arg1: i32) -> (i32, i32, i32) {
    %c0_i32 = arith.constant 0 : i32
    %c0_i32_0 = arith.constant 0 : i32
    return %arg0, %arg1, %c0_i32 : i32, i32, i32
  }
}

module attributes {stable_mosaic.version = 11 : i64} {
  func.func @_proj_kernel(%arg0: i32, %arg1: memref<16x32xbf16, #tpu.memory_space<vmem>>, %arg2: memref<32x32xbf16, #tpu.memory_space<vmem>>, %arg3: memref<1x32xf32, #tpu.memory_space<vmem>>, %arg4: memref<16x32xf32, #tpu.memory_space<vmem>>) attributes {dimension_semantics = [#tpu.dimension_semantics<parallel>], iteration_bounds = array<i64: 1>, scalar_prefetch = 0 : i64, scratch_operands = 0 : i64, tpu.core_type = #tpu.core_type<tc>, window_params = [{transform_indices = @transform_0, window_bounds = array<i64: 16, 32>}, {pipeline_mode = #tpu.pipeline_mode<synchronous>, transform_indices = @transform_1, window_bounds = array<i64: 32, 32>}, {pipeline_mode = #tpu.pipeline_mode<synchronous>, transform_indices = @transform_2, window_bounds = array<i64: 1, 32>}, {transform_indices = @transform_3, window_bounds = array<i64: 16, 32>}]} {
    %c0 = arith.constant 0 : index
    %c0_0 = arith.constant 0 : index
    %0 = vector.load %arg1[%c0, %c0_0] : memref<16x32xbf16, #tpu.memory_space<vmem>>, vector<16x32xbf16>
    %c0_1 = arith.constant 0 : index
    %c0_2 = arith.constant 0 : index
    %1 = vector.load %arg2[%c0_1, %c0_2] : memref<32x32xbf16, #tpu.memory_space<vmem>>, vector<32x32xbf16>
    %cst = arith.constant dense<0.000000e+00> : vector<16x32xf32>
    %2 = tpu.matmul %0, %1, %cst {dimension_numbers = #tpu.dot_dimension_numbers<[1], [1], [0], [0], [0, 0, 1, 0], [], []>} : vector<16x32xbf16>, vector<32x32xbf16>, vector<16x32xf32> -> vector<16x32xf32>
    %c0_3 = arith.constant 0 : index
    %c0_4 = arith.constant 0 : index
    %3 = vector.load %arg3[%c0_3, %c0_4] : memref<1x32xf32, #tpu.memory_space<vmem>>, vector<1x32xf32>
    %4 = vector.broadcast %3 : vector<1x32xf32> to vector<16x32xf32>
    %5 = arith.addf %2, %4 : vector<16x32xf32>
    %c0_5 = arith.constant 0 : index
    %c0_6 = arith.constant 0 : index
    %6 = vector.load %arg4[%c0_5, %c0_6] : memref<16x32xf32, #tpu.memory_space<vmem>>, vector<16x32xf32>
    tpu.vector_store %arg4[%c0_5, %c0_6], %5 {strides = array<i32>} : memref<16x32xf32, #tpu.memory_space<vmem>>, vector<16x32xf32>,
    return
  }
  func.func @transform_0(%arg0: i32) -> (i32, i32) {
    %c0_i32 = arith.constant 0 : i32
    %c0_i32_0 = arith.constant 0 : i32
    return %arg0, %c0_i32 : i32, i32
  }
  func.func @transform_1(%arg0: i32) -> (i32, i32) {
    %c0_i32 = arith.constant 0 : i32
    %c0_i32_0 = arith.constant 0 : i32
    %c0_i32_1 = arith.constant 0 : i32
    return %c0_i32, %c0_i32_0 : i32, i32
  }
  func.func @transform_2(%arg0: i32) -> (i32, i32) {
    %c0_i32 = arith.constant 0 : i32
    %c0_i32_0 = arith.constant 0 : i32
    %c0_i32_1 = arith.constant 0 : i32
    return %c0_i32, %c0_i32_0 : i32, i32
  }
  func.func @transform_3(%arg0: i32) -> (i32, i32) {
    %c0_i32 = arith.constant 0 : i32
    %c0_i32_0 = arith.constant 0 : i32
    return %arg0, %c0_i32 : i32, i32
  }
}

module attributes {stable_mosaic.version = 11 : i64} {
  func.func @_flash_attn_kernel(%arg0: i32, %arg1: i32, %arg2: i32, %arg3: memref<1x1x8x32xbf16, #tpu.memory_space<vmem>>, %arg4: memref<1x1x8x32xbf16, #tpu.memory_space<vmem>>, %arg5: memref<1x1x8x32xbf16, #tpu.memory_space<vmem>>, %arg6: memref<1x8x32xbf16, #tpu.memory_space<vmem>>, %arg7: memref<4x8x128xf32, #tpu.memory_space<vmem>>, %arg8: memref<4x8x128xf32, #tpu.memory_space<vmem>>, %arg9: memref<4x8x8xf32, #tpu.memory_space<vmem>>) attributes {dimension_semantics = [#tpu.dimension_semantics<parallel>, #tpu.dimension_semantics<parallel>, #tpu.dimension_semantics<arbitrary>], iteration_bounds = array<i64: 2, 1, 1>, scalar_prefetch = 0 : i64, scratch_operands = 3 : i64, tpu.core_type = #tpu.core_type<tc>, window_params = [{transform_indices = @transform_0, window_bounds = array<i64: 1, 1, 8, 32>}, {transform_indices = @transform_1, window_bounds = array<i64: 1, 1, 8, 32>}, {transform_indices = @transform_2, window_bounds = array<i64: 1, 1, 8, 32>}, {transform_indices = @transform_3, window_bounds = array<i64: 1, 8, 32>}]} {
    %c0_i32 = arith.constant 0 : i32
    %0 = arith.cmpi eq, %arg2, %c0_i32 : i32
    %1 = arith.extui %0 : i1 to i32
    %c0_i32_0 = arith.constant 0 : i32
    %2 = arith.cmpi ne, %1, %c0_i32_0 : i32
    scf.if %2 {
      %cst_131 = arith.constant 0xFF800000 : f32
      %178 = vector.broadcast %cst_131 : f32 to vector<4x8x128xf32>
      %c0_132 = arith.constant 0 : index
      %c0_133 = arith.constant 0 : index
      %c0_134 = arith.constant 0 : index
      %179 = vector.load %arg7[%c0_132, %c0_133, %c0_134] : memref<4x8x128xf32, #tpu.memory_space<vmem>>, vector<4x8x128xf32>
      tpu.vector_store %arg7[%c0_132, %c0_133, %c0_134], %178 {strides = array<i32>} : memref<4x8x128xf32, #tpu.memory_space<vmem>>, vector<4x8x128xf32>,
      %cst_135 = arith.constant 0.000000e+00 : f32
      %180 = vector.broadcast %cst_135 : f32 to vector<4x8x128xf32>
      %c0_136 = arith.constant 0 : index
      %c0_137 = arith.constant 0 : index
      %c0_138 = arith.constant 0 : index
      %181 = vector.load %arg8[%c0_136, %c0_137, %c0_138] : memref<4x8x128xf32, #tpu.memory_space<vmem>>, vector<4x8x128xf32>
      tpu.vector_store %arg8[%c0_136, %c0_137, %c0_138], %180 {strides = array<i32>} : memref<4x8x128xf32, #tpu.memory_space<vmem>>, vector<4x8x128xf32>,
      %cst_139 = arith.constant 0.000000e+00 : f32
      %182 = vector.broadcast %cst_139 : f32 to vector<4x8x8xf32>
      %c0_140 = arith.constant 0 : index
      %c0_141 = arith.constant 0 : index
      %c0_142 = arith.constant 0 : index
      %183 = vector.load %arg9[%c0_140, %c0_141, %c0_142] : memref<4x8x8xf32, #tpu.memory_space<vmem>>, vector<4x8x8xf32>
      tpu.vector_store %arg9[%c0_140, %c0_141, %c0_142], %182 {strides = array<i32>} : memref<4x8x8xf32, #tpu.memory_space<vmem>>, vector<4x8x8xf32>,
    } else {
    }
    %c0 = arith.constant 0 : index
    %c0_1 = arith.constant 0 : index
    %c0_2 = arith.constant 0 : index
    %c0_3 = arith.constant 0 : index
    %3 = vector.load %arg3[%c0, %c0_1, %c0_2, %c0_3] : memref<1x1x8x32xbf16, #tpu.memory_space<vmem>>, vector<1x1x8x8xbf16>
    %4 = vector.shape_cast %3 : vector<1x1x8x8xbf16> to vector<8x8xbf16>
    %c0_4 = arith.constant 0 : index
    %c0_5 = arith.constant 0 : index
    %c0_6 = arith.constant 0 : index
    %c0_7 = arith.constant 0 : index
    %5 = vector.load %arg4[%c0_4, %c0_5, %c0_6, %c0_7] : memref<1x1x8x32xbf16, #tpu.memory_space<vmem>>, vector<1x1x8x8xbf16>
    %6 = vector.shape_cast %5 : vector<1x1x8x8xbf16> to vector<8x8xbf16>
    %cst = arith.constant dense<0.000000e+00> : vector<8x8xf32>
    %7 = tpu.matmul %4, %6, %cst {dimension_numbers = #tpu.dot_dimension_numbers<[1], [1], [0], [0], [0, 0, 1, 0], [], []>} : vector<8x8xbf16>, vector<8x8xbf16>, vector<8x8xf32> -> vector<8x8xf32>
    %c0_8 = arith.constant 0 : index
    %c0_9 = arith.constant 0 : index
    %c0_10 = arith.constant 0 : index
    %8 = vector.load %arg7[%c0_8, %c0_9, %c0_10] : memref<4x8x128xf32, #tpu.memory_space<vmem>>, vector<1x8x128xf32>
    %9 = vector.shape_cast %8 : vector<1x8x128xf32> to vector<8x128xf32>
    %c0_11 = arith.constant 0 : index
    %c0_12 = arith.constant 0 : index
    %c0_13 = arith.constant 0 : index
    %10 = vector.load %arg8[%c0_11, %c0_12, %c0_13] : memref<4x8x128xf32, #tpu.memory_space<vmem>>, vector<1x8x128xf32>
    %11 = vector.shape_cast %10 : vector<1x8x128xf32> to vector<8x128xf32>
    %cst_14 = arith.constant dense<0xFF800000> : vector<8xf32>
    %12 = vector.multi_reduction <maximumf>, %7, %cst_14 [1] : vector<8x8xf32> to vector<8xf32>
    %13 = vector.shape_cast %12 : vector<8xf32> to vector<8x1xf32>
    %14 = vector.broadcast %13 : vector<8x1xf32> to vector<8x128xf32>
    %15 = arith.maximumf %9, %14 : vector<8x128xf32>
    %16 = arith.subf %9, %15 : vector<8x128xf32>
    %17 = math.exp %16 : vector<8x128xf32>
    %18 = vector.extract_strided_slice %15 {offsets = [0, 0], sizes = [8, 1], strides = [1, 1]} : vector<8x128xf32> to vector<8x1xf32>
    %19 = vector.broadcast %18 : vector<8x1xf32> to vector<8x8xf32>
    %20 = arith.subf %7, %19 : vector<8x8xf32>
    %21 = math.exp %20 : vector<8x8xf32>
    %22 = arith.mulf %17, %11 : vector<8x128xf32>
    %cst_15 = arith.constant dense<0.000000e+00> : vector<8xf32>
    %23 = vector.multi_reduction <add>, %21, %cst_15 [1] : vector<8x8xf32> to vector<8xf32>
    %24 = vector.shape_cast %23 : vector<8xf32> to vector<8x1xf32>
    %25 = vector.broadcast %24 : vector<8x1xf32> to vector<8x128xf32>
    %26 = arith.addf %22, %25 : vector<8x128xf32>
    %c0_16 = arith.constant 0 : index
    %c0_17 = arith.constant 0 : index
    %c0_18 = arith.constant 0 : index
    %27 = vector.load %arg8[%c0_16, %c0_17, %c0_18] : memref<4x8x128xf32, #tpu.memory_space<vmem>>, vector<1x8x128xf32>
    %28 = vector.shape_cast %27 : vector<1x8x128xf32> to vector<8x128xf32>
    %29 = vector.shape_cast %26 : vector<8x128xf32> to vector<1x8x128xf32>
    tpu.vector_store %arg8[%c0_16, %c0_17, %c0_18], %29 {strides = array<i32>} : memref<4x8x128xf32, #tpu.memory_space<vmem>>, vector<1x8x128xf32>,
    %c0_19 = arith.constant 0 : index
    %c0_20 = arith.constant 0 : index
    %c0_21 = arith.constant 0 : index
    %30 = vector.load %arg7[%c0_19, %c0_20, %c0_21] : memref<4x8x128xf32, #tpu.memory_space<vmem>>, vector<1x8x128xf32>
    %31 = vector.shape_cast %30 : vector<1x8x128xf32> to vector<8x128xf32>
    %32 = vector.shape_cast %15 : vector<8x128xf32> to vector<1x8x128xf32>
    tpu.vector_store %arg7[%c0_19, %c0_20, %c0_21], %32 {strides = array<i32>} : memref<4x8x128xf32, #tpu.memory_space<vmem>>, vector<1x8x128xf32>,
    %33 = arith.truncf %21 : vector<8x8xf32> to vector<8x8xbf16>
    %c0_22 = arith.constant 0 : index
    %c0_23 = arith.constant 0 : index
    %c0_24 = arith.constant 0 : index
    %c0_25 = arith.constant 0 : index
    %34 = vector.load %arg5[%c0_22, %c0_23, %c0_24, %c0_25] : memref<1x1x8x32xbf16, #tpu.memory_space<vmem>>, vector<1x1x8x8xbf16>
    %35 = vector.shape_cast %34 : vector<1x1x8x8xbf16> to vector<8x8xbf16>
    %cst_26 = arith.constant dense<0.000000e+00> : vector<8x8xf32>
    %36 = tpu.matmul %33, %35, %cst_26 {dimension_numbers = #tpu.dot_dimension_numbers<[1], [0], [0], [1], [0, 0, 1, 1], [], []>} : vector<8x8xbf16>, vector<8x8xbf16>, vector<8x8xf32> -> vector<8x8xf32>
    %c0_27 = arith.constant 0 : index
    %c0_28 = arith.constant 0 : index
    %c0_29 = arith.constant 0 : index
    %37 = vector.load %arg9[%c0_27, %c0_28, %c0_29] : memref<4x8x8xf32, #tpu.memory_space<vmem>>, vector<1x8x8xf32>
    %38 = vector.shape_cast %37 : vector<1x8x8xf32> to vector<8x8xf32>
    %39 = vector.extract_strided_slice %17 {offsets = [0, 0], sizes = [8, 1], strides = [1, 1]} : vector<8x128xf32> to vector<8x1xf32>
    %40 = vector.broadcast %39 : vector<8x1xf32> to vector<8x8xf32>
    %41 = arith.mulf %38, %40 : vector<8x8xf32>
    %42 = arith.addf %41, %36 : vector<8x8xf32>
    %c0_30 = arith.constant 0 : index
    %c0_31 = arith.constant 0 : index
    %c0_32 = arith.constant 0 : index
    %43 = vector.load %arg9[%c0_30, %c0_31, %c0_32] : memref<4x8x8xf32, #tpu.memory_space<vmem>>, vector<1x8x8xf32>
    %44 = vector.shape_cast %43 : vector<1x8x8xf32> to vector<8x8xf32>
    %45 = vector.shape_cast %42 : vector<8x8xf32> to vector<1x8x8xf32>
    tpu.vector_store %arg9[%c0_30, %c0_31, %c0_32], %45 {strides = array<i32>} : memref<4x8x8xf32, #tpu.memory_space<vmem>>, vector<1x8x8xf32>,
    %c0_33 = arith.constant 0 : index
    %c0_34 = arith.constant 0 : index
    %c0_35 = arith.constant 0 : index
    %c8 = arith.constant 8 : index
    %46 = vector.load %arg3[%c0_33, %c0_34, %c0_35, %c8] : memref<1x1x8x32xbf16, #tpu.memory_space<vmem>>, vector<1x1x8x8xbf16>
    %47 = vector.shape_cast %46 : vector<1x1x8x8xbf16> to vector<8x8xbf16>
    %c0_36 = arith.constant 0 : index
    %c0_37 = arith.constant 0 : index
    %c0_38 = arith.constant 0 : index
    %c8_39 = arith.constant 8 : index
    %48 = vector.load %arg4[%c0_36, %c0_37, %c0_38, %c8_39] : memref<1x1x8x32xbf16, #tpu.memory_space<vmem>>, vector<1x1x8x8xbf16>
    %49 = vector.shape_cast %48 : vector<1x1x8x8xbf16> to vector<8x8xbf16>
    %cst_40 = arith.constant dense<0.000000e+00> : vector<8x8xf32>
    %50 = tpu.matmul %47, %49, %cst_40 {dimension_numbers = #tpu.dot_dimension_numbers<[1], [1], [0], [0], [0, 0, 1, 0], [], []>} : vector<8x8xbf16>, vector<8x8xbf16>, vector<8x8xf32> -> vector<8x8xf32>
    %c1 = arith.constant 1 : index
    %c0_41 = arith.constant 0 : index
    %c0_42 = arith.constant 0 : index
    %51 = vector.load %arg7[%c1, %c0_41, %c0_42] : memref<4x8x128xf32, #tpu.memory_space<vmem>>, vector<1x8x128xf32>
    %52 = vector.shape_cast %51 : vector<1x8x128xf32> to vector<8x128xf32>
    %c1_43 = arith.constant 1 : index
    %c0_44 = arith.constant 0 : index
    %c0_45 = arith.constant 0 : index
    %53 = vector.load %arg8[%c1_43, %c0_44, %c0_45] : memref<4x8x128xf32, #tpu.memory_space<vmem>>, vector<1x8x128xf32>
    %54 = vector.shape_cast %53 : vector<1x8x128xf32> to vector<8x128xf32>
    %cst_46 = arith.constant dense<0xFF800000> : vector<8xf32>
    %55 = vector.multi_reduction <maximumf>, %50, %cst_46 [1] : vector<8x8xf32> to vector<8xf32>
    %56 = vector.shape_cast %55 : vector<8xf32> to vector<8x1xf32>
    %57 = vector.broadcast %56 : vector<8x1xf32> to vector<8x128xf32>
    %58 = arith.maximumf %52, %57 : vector<8x128xf32>
    %59 = arith.subf %52, %58 : vector<8x128xf32>
    %60 = math.exp %59 : vector<8x128xf32>
    %61 = vector.extract_strided_slice %58 {offsets = [0, 0], sizes = [8, 1], strides = [1, 1]} : vector<8x128xf32> to vector<8x1xf32>
    %62 = vector.broadcast %61 : vector<8x1xf32> to vector<8x8xf32>
    %63 = arith.subf %50, %62 : vector<8x8xf32>
    %64 = math.exp %63 : vector<8x8xf32>
    %65 = arith.mulf %60, %54 : vector<8x128xf32>
    %cst_47 = arith.constant dense<0.000000e+00> : vector<8xf32>
    %66 = vector.multi_reduction <add>, %64, %cst_47 [1] : vector<8x8xf32> to vector<8xf32>
    %67 = vector.shape_cast %66 : vector<8xf32> to vector<8x1xf32>
    %68 = vector.broadcast %67 : vector<8x1xf32> to vector<8x128xf32>
    %69 = arith.addf %65, %68 : vector<8x128xf32>
    %c1_48 = arith.constant 1 : index
    %c0_49 = arith.constant 0 : index
    %c0_50 = arith.constant 0 : index
    %70 = vector.load %arg8[%c1_48, %c0_49, %c0_50] : memref<4x8x128xf32, #tpu.memory_space<vmem>>, vector<1x8x128xf32>
    %71 = vector.shape_cast %70 : vector<1x8x128xf32> to vector<8x128xf32>
    %72 = vector.shape_cast %69 : vector<8x128xf32> to vector<1x8x128xf32>
    tpu.vector_store %arg8[%c1_48, %c0_49, %c0_50], %72 {strides = array<i32>} : memref<4x8x128xf32, #tpu.memory_space<vmem>>, vector<1x8x128xf32>,
    %c1_51 = arith.constant 1 : index
    %c0_52 = arith.constant 0 : index
    %c0_53 = arith.constant 0 : index
    %73 = vector.load %arg7[%c1_51, %c0_52, %c0_53] : memref<4x8x128xf32, #tpu.memory_space<vmem>>, vector<1x8x128xf32>
    %74 = vector.shape_cast %73 : vector<1x8x128xf32> to vector<8x128xf32>
    %75 = vector.shape_cast %58 : vector<8x128xf32> to vector<1x8x128xf32>
    tpu.vector_store %arg7[%c1_51, %c0_52, %c0_53], %75 {strides = array<i32>} : memref<4x8x128xf32, #tpu.memory_space<vmem>>, vector<1x8x128xf32>,
    %76 = arith.truncf %64 : vector<8x8xf32> to vector<8x8xbf16>
    %c0_54 = arith.constant 0 : index
    %c0_55 = arith.constant 0 : index
    %c0_56 = arith.constant 0 : index
    %c8_57 = arith.constant 8 : index
    %77 = vector.load %arg5[%c0_54, %c0_55, %c0_56, %c8_57] : memref<1x1x8x32xbf16, #tpu.memory_space<vmem>>, vector<1x1x8x8xbf16>
    %78 = vector.shape_cast %77 : vector<1x1x8x8xbf16> to vector<8x8xbf16>
    %cst_58 = arith.constant dense<0.000000e+00> : vector<8x8xf32>
    %79 = tpu.matmul %76, %78, %cst_58 {dimension_numbers = #tpu.dot_dimension_numbers<[1], [0], [0], [1], [0, 0, 1, 1], [], []>} : vector<8x8xbf16>, vector<8x8xbf16>, vector<8x8xf32> -> vector<8x8xf32>
    %c1_59 = arith.constant 1 : index
    %c0_60 = arith.constant 0 : index
    %c0_61 = arith.constant 0 : index
    %80 = vector.load %arg9[%c1_59, %c0_60, %c0_61] : memref<4x8x8xf32, #tpu.memory_space<vmem>>, vector<1x8x8xf32>
    %81 = vector.shape_cast %80 : vector<1x8x8xf32> to vector<8x8xf32>
    %82 = vector.extract_strided_slice %60 {offsets = [0, 0], sizes = [8, 1], strides = [1, 1]} : vector<8x128xf32> to vector<8x1xf32>
    %83 = vector.broadcast %82 : vector<8x1xf32> to vector<8x8xf32>
    %84 = arith.mulf %81, %83 : vector<8x8xf32>
    %85 = arith.addf %84, %79 : vector<8x8xf32>
    %c1_62 = arith.constant 1 : index
    %c0_63 = arith.constant 0 : index
    %c0_64 = arith.constant 0 : index
    %86 = vector.load %arg9[%c1_62, %c0_63, %c0_64] : memref<4x8x8xf32, #tpu.memory_space<vmem>>, vector<1x8x8xf32>
    %87 = vector.shape_cast %86 : vector<1x8x8xf32> to vector<8x8xf32>
    %88 = vector.shape_cast %85 : vector<8x8xf32> to vector<1x8x8xf32>
    tpu.vector_store %arg9[%c1_62, %c0_63, %c0_64], %88 {strides = array<i32>} : memref<4x8x8xf32, #tpu.memory_space<vmem>>, vector<1x8x8xf32>,
    %c0_65 = arith.constant 0 : index
    %c0_66 = arith.constant 0 : index
    %c0_67 = arith.constant 0 : index
    %c16 = arith.constant 16 : index
    %89 = vector.load %arg3[%c0_65, %c0_66, %c0_67, %c16] : memref<1x1x8x32xbf16, #tpu.memory_space<vmem>>, vector<1x1x8x8xbf16>
    %90 = vector.shape_cast %89 : vector<1x1x8x8xbf16> to vector<8x8xbf16>
    %c0_68 = arith.constant 0 : index
    %c0_69 = arith.constant 0 : index
    %c0_70 = arith.constant 0 : index
    %c16_71 = arith.constant 16 : index
    %91 = vector.load %arg4[%c0_68, %c0_69, %c0_70, %c16_71] : memref<1x1x8x32xbf16, #tpu.memory_space<vmem>>, vector<1x1x8x8xbf16>
    %92 = vector.shape_cast %91 : vector<1x1x8x8xbf16> to vector<8x8xbf16>
    %cst_72 = arith.constant dense<0.000000e+00> : vector<8x8xf32>
    %93 = tpu.matmul %90, %92, %cst_72 {dimension_numbers = #tpu.dot_dimension_numbers<[1], [1], [0], [0], [0, 0, 1, 0], [], []>} : vector<8x8xbf16>, vector<8x8xbf16>, vector<8x8xf32> -> vector<8x8xf32>
    %c2 = arith.constant 2 : index
    %c0_73 = arith.constant 0 : index
    %c0_74 = arith.constant 0 : index
    %94 = vector.load %arg7[%c2, %c0_73, %c0_74] : memref<4x8x128xf32, #tpu.memory_space<vmem>>, vector<1x8x128xf32>
    %95 = vector.shape_cast %94 : vector<1x8x128xf32> to vector<8x128xf32>
    %c2_75 = arith.constant 2 : index
    %c0_76 = arith.constant 0 : index
    %c0_77 = arith.constant 0 : index
    %96 = vector.load %arg8[%c2_75, %c0_76, %c0_77] : memref<4x8x128xf32, #tpu.memory_space<vmem>>, vector<1x8x128xf32>
    %97 = vector.shape_cast %96 : vector<1x8x128xf32> to vector<8x128xf32>
    %cst_78 = arith.constant dense<0xFF800000> : vector<8xf32>
    %98 = vector.multi_reduction <maximumf>, %93, %cst_78 [1] : vector<8x8xf32> to vector<8xf32>
    %99 = vector.shape_cast %98 : vector<8xf32> to vector<8x1xf32>
    %100 = vector.broadcast %99 : vector<8x1xf32> to vector<8x128xf32>
    %101 = arith.maximumf %95, %100 : vector<8x128xf32>
    %102 = arith.subf %95, %101 : vector<8x128xf32>
    %103 = math.exp %102 : vector<8x128xf32>
    %104 = vector.extract_strided_slice %101 {offsets = [0, 0], sizes = [8, 1], strides = [1, 1]} : vector<8x128xf32> to vector<8x1xf32>
    %105 = vector.broadcast %104 : vector<8x1xf32> to vector<8x8xf32>
    %106 = arith.subf %93, %105 : vector<8x8xf32>
    %107 = math.exp %106 : vector<8x8xf32>
    %108 = arith.mulf %103, %97 : vector<8x128xf32>
    %cst_79 = arith.constant dense<0.000000e+00> : vector<8xf32>
    %109 = vector.multi_reduction <add>, %107, %cst_79 [1] : vector<8x8xf32> to vector<8xf32>
    %110 = vector.shape_cast %109 : vector<8xf32> to vector<8x1xf32>
    %111 = vector.broadcast %110 : vector<8x1xf32> to vector<8x128xf32>
    %112 = arith.addf %108, %111 : vector<8x128xf32>
    %c2_80 = arith.constant 2 : index
    %c0_81 = arith.constant 0 : index
    %c0_82 = arith.constant 0 : index
    %113 = vector.load %arg8[%c2_80, %c0_81, %c0_82] : memref<4x8x128xf32, #tpu.memory_space<vmem>>, vector<1x8x128xf32>
    %114 = vector.shape_cast %113 : vector<1x8x128xf32> to vector<8x128xf32>
    %115 = vector.shape_cast %112 : vector<8x128xf32> to vector<1x8x128xf32>
    tpu.vector_store %arg8[%c2_80, %c0_81, %c0_82], %115 {strides = array<i32>} : memref<4x8x128xf32, #tpu.memory_space<vmem>>, vector<1x8x128xf32>,
    %c2_83 = arith.constant 2 : index
    %c0_84 = arith.constant 0 : index
    %c0_85 = arith.constant 0 : index
    %116 = vector.load %arg7[%c2_83, %c0_84, %c0_85] : memref<4x8x128xf32, #tpu.memory_space<vmem>>, vector<1x8x128xf32>
    %117 = vector.shape_cast %116 : vector<1x8x128xf32> to vector<8x128xf32>
    %118 = vector.shape_cast %101 : vector<8x128xf32> to vector<1x8x128xf32>
    tpu.vector_store %arg7[%c2_83, %c0_84, %c0_85], %118 {strides = array<i32>} : memref<4x8x128xf32, #tpu.memory_space<vmem>>, vector<1x8x128xf32>,
    %119 = arith.truncf %107 : vector<8x8xf32> to vector<8x8xbf16>
    %c0_86 = arith.constant 0 : index
    %c0_87 = arith.constant 0 : index
    %c0_88 = arith.constant 0 : index
    %c16_89 = arith.constant 16 : index
    %120 = vector.load %arg5[%c0_86, %c0_87, %c0_88, %c16_89] : memref<1x1x8x32xbf16, #tpu.memory_space<vmem>>, vector<1x1x8x8xbf16>
    %121 = vector.shape_cast %120 : vector<1x1x8x8xbf16> to vector<8x8xbf16>
    %cst_90 = arith.constant dense<0.000000e+00> : vector<8x8xf32>
    %122 = tpu.matmul %119, %121, %cst_90 {dimension_numbers = #tpu.dot_dimension_numbers<[1], [0], [0], [1], [0, 0, 1, 1], [], []>} : vector<8x8xbf16>, vector<8x8xbf16>, vector<8x8xf32> -> vector<8x8xf32>
    %c2_91 = arith.constant 2 : index
    %c0_92 = arith.constant 0 : index
    %c0_93 = arith.constant 0 : index
    %123 = vector.load %arg9[%c2_91, %c0_92, %c0_93] : memref<4x8x8xf32, #tpu.memory_space<vmem>>, vector<1x8x8xf32>
    %124 = vector.shape_cast %123 : vector<1x8x8xf32> to vector<8x8xf32>
    %125 = vector.extract_strided_slice %103 {offsets = [0, 0], sizes = [8, 1], strides = [1, 1]} : vector<8x128xf32> to vector<8x1xf32>
    %126 = vector.broadcast %125 : vector<8x1xf32> to vector<8x8xf32>
    %127 = arith.mulf %124, %126 : vector<8x8xf32>
    %128 = arith.addf %127, %122 : vector<8x8xf32>
    %c2_94 = arith.constant 2 : index
    %c0_95 = arith.constant 0 : index
    %c0_96 = arith.constant 0 : index
    %129 = vector.load %arg9[%c2_94, %c0_95, %c0_96] : memref<4x8x8xf32, #tpu.memory_space<vmem>>, vector<1x8x8xf32>
    %130 = vector.shape_cast %129 : vector<1x8x8xf32> to vector<8x8xf32>
    %131 = vector.shape_cast %128 : vector<8x8xf32> to vector<1x8x8xf32>
    tpu.vector_store %arg9[%c2_94, %c0_95, %c0_96], %131 {strides = array<i32>} : memref<4x8x8xf32, #tpu.memory_space<vmem>>, vector<1x8x8xf32>,
    %c0_97 = arith.constant 0 : index
    %c0_98 = arith.constant 0 : index
    %c0_99 = arith.constant 0 : index
    %c24 = arith.constant 24 : index
    %132 = vector.load %arg3[%c0_97, %c0_98, %c0_99, %c24] : memref<1x1x8x32xbf16, #tpu.memory_space<vmem>>, vector<1x1x8x8xbf16>
    %133 = vector.shape_cast %132 : vector<1x1x8x8xbf16> to vector<8x8xbf16>
    %c0_100 = arith.constant 0 : index
    %c0_101 = arith.constant 0 : index
    %c0_102 = arith.constant 0 : index
    %c24_103 = arith.constant 24 : index
    %134 = vector.load %arg4[%c0_100, %c0_101, %c0_102, %c24_103] : memref<1x1x8x32xbf16, #tpu.memory_space<vmem>>, vector<1x1x8x8xbf16>
    %135 = vector.shape_cast %134 : vector<1x1x8x8xbf16> to vector<8x8xbf16>
    %cst_104 = arith.constant dense<0.000000e+00> : vector<8x8xf32>
    %136 = tpu.matmul %133, %135, %cst_104 {dimension_numbers = #tpu.dot_dimension_numbers<[1], [1], [0], [0], [0, 0, 1, 0], [], []>} : vector<8x8xbf16>, vector<8x8xbf16>, vector<8x8xf32> -> vector<8x8xf32>
    %c3 = arith.constant 3 : index
    %c0_105 = arith.constant 0 : index
    %c0_106 = arith.constant 0 : index
    %137 = vector.load %arg7[%c3, %c0_105, %c0_106] : memref<4x8x128xf32, #tpu.memory_space<vmem>>, vector<1x8x128xf32>
    %138 = vector.shape_cast %137 : vector<1x8x128xf32> to vector<8x128xf32>
    %c3_107 = arith.constant 3 : index
    %c0_108 = arith.constant 0 : index
    %c0_109 = arith.constant 0 : index
    %139 = vector.load %arg8[%c3_107, %c0_108, %c0_109] : memref<4x8x128xf32, #tpu.memory_space<vmem>>, vector<1x8x128xf32>
    %140 = vector.shape_cast %139 : vector<1x8x128xf32> to vector<8x128xf32>
    %cst_110 = arith.constant dense<0xFF800000> : vector<8xf32>
    %141 = vector.multi_reduction <maximumf>, %136, %cst_110 [1] : vector<8x8xf32> to vector<8xf32>
    %142 = vector.shape_cast %141 : vector<8xf32> to vector<8x1xf32>
    %143 = vector.broadcast %142 : vector<8x1xf32> to vector<8x128xf32>
    %144 = arith.maximumf %138, %143 : vector<8x128xf32>
    %145 = arith.subf %138, %144 : vector<8x128xf32>
    %146 = math.exp %145 : vector<8x128xf32>
    %147 = vector.extract_strided_slice %144 {offsets = [0, 0], sizes = [8, 1], strides = [1, 1]} : vector<8x128xf32> to vector<8x1xf32>
    %148 = vector.broadcast %147 : vector<8x1xf32> to vector<8x8xf32>
    %149 = arith.subf %136, %148 : vector<8x8xf32>
    %150 = math.exp %149 : vector<8x8xf32>
    %151 = arith.mulf %146, %140 : vector<8x128xf32>
    %cst_111 = arith.constant dense<0.000000e+00> : vector<8xf32>
    %152 = vector.multi_reduction <add>, %150, %cst_111 [1] : vector<8x8xf32> to vector<8xf32>
    %153 = vector.shape_cast %152 : vector<8xf32> to vector<8x1xf32>
    %154 = vector.broadcast %153 : vector<8x1xf32> to vector<8x128xf32>
    %155 = arith.addf %151, %154 : vector<8x128xf32>
    %c3_112 = arith.constant 3 : index
    %c0_113 = arith.constant 0 : index
    %c0_114 = arith.constant 0 : index
    %156 = vector.load %arg8[%c3_112, %c0_113, %c0_114] : memref<4x8x128xf32, #tpu.memory_space<vmem>>, vector<1x8x128xf32>
    %157 = vector.shape_cast %156 : vector<1x8x128xf32> to vector<8x128xf32>
    %158 = vector.shape_cast %155 : vector<8x128xf32> to vector<1x8x128xf32>
    tpu.vector_store %arg8[%c3_112, %c0_113, %c0_114], %158 {strides = array<i32>} : memref<4x8x128xf32, #tpu.memory_space<vmem>>, vector<1x8x128xf32>,
    %c3_115 = arith.constant 3 : index
    %c0_116 = arith.constant 0 : index
    %c0_117 = arith.constant 0 : index
    %159 = vector.load %arg7[%c3_115, %c0_116, %c0_117] : memref<4x8x128xf32, #tpu.memory_space<vmem>>, vector<1x8x128xf32>
    %160 = vector.shape_cast %159 : vector<1x8x128xf32> to vector<8x128xf32>
    %161 = vector.shape_cast %144 : vector<8x128xf32> to vector<1x8x128xf32>
    tpu.vector_store %arg7[%c3_115, %c0_116, %c0_117], %161 {strides = array<i32>} : memref<4x8x128xf32, #tpu.memory_space<vmem>>, vector<1x8x128xf32>,
    %162 = arith.truncf %150 : vector<8x8xf32> to vector<8x8xbf16>
    %c0_118 = arith.constant 0 : index
    %c0_119 = arith.constant 0 : index
    %c0_120 = arith.constant 0 : index
    %c24_121 = arith.constant 24 : index
    %163 = vector.load %arg5[%c0_118, %c0_119, %c0_120, %c24_121] : memref<1x1x8x32xbf16, #tpu.memory_space<vmem>>, vector<1x1x8x8xbf16>
    %164 = vector.shape_cast %163 : vector<1x1x8x8xbf16> to vector<8x8xbf16>
    %cst_122 = arith.constant dense<0.000000e+00> : vector<8x8xf32>
    %165 = tpu.matmul %162, %164, %cst_122 {dimension_numbers = #tpu.dot_dimension_numbers<[1], [0], [0], [1], [0, 0, 1, 1], [], []>} : vector<8x8xbf16>, vector<8x8xbf16>, vector<8x8xf32> -> vector<8x8xf32>
    %c3_123 = arith.constant 3 : index
    %c0_124 = arith.constant 0 : index
    %c0_125 = arith.constant 0 : index
    %166 = vector.load %arg9[%c3_123, %c0_124, %c0_125] : memref<4x8x8xf32, #tpu.memory_space<vmem>>, vector<1x8x8xf32>
    %167 = vector.shape_cast %166 : vector<1x8x8xf32> to vector<8x8xf32>
    %168 = vector.extract_strided_slice %146 {offsets = [0, 0], sizes = [8, 1], strides = [1, 1]} : vector<8x128xf32> to vector<8x1xf32>
    %169 = vector.broadcast %168 : vector<8x1xf32> to vector<8x8xf32>
    %170 = arith.mulf %167, %169 : vector<8x8xf32>
    %171 = arith.addf %170, %165 : vector<8x8xf32>
    %c3_126 = arith.constant 3 : index
    %c0_127 = arith.constant 0 : index
    %c0_128 = arith.constant 0 : index
    %172 = vector.load %arg9[%c3_126, %c0_127, %c0_128] : memref<4x8x8xf32, #tpu.memory_space<vmem>>, vector<1x8x8xf32>
    %173 = vector.shape_cast %172 : vector<1x8x8xf32> to vector<8x8xf32>
    %174 = vector.shape_cast %171 : vector<8x8xf32> to vector<1x8x8xf32>
    tpu.vector_store %arg9[%c3_126, %c0_127, %c0_128], %174 {strides = array<i32>} : memref<4x8x8xf32, #tpu.memory_space<vmem>>, vector<1x8x8xf32>,
    %c0_i32_129 = arith.constant 0 : i32
    %175 = arith.cmpi eq, %arg2, %c0_i32_129 : i32
    %176 = arith.extui %175 : i1 to i32
    %c0_i32_130 = arith.constant 0 : i32
    %177 = arith.cmpi ne, %176, %c0_i32_130 : i32
    scf.if %177 {
      %c0_131 = arith.constant 0 : index
      %c0_132 = arith.constant 0 : index
      %c0_133 = arith.constant 0 : index
      %178 = vector.load %arg8[%c0_131, %c0_132, %c0_133] : memref<4x8x128xf32, #tpu.memory_space<vmem>>, vector<1x8x128xf32>
      %179 = vector.shape_cast %178 : vector<1x8x128xf32> to vector<8x128xf32>
      %180 = vector.extract_strided_slice %179 {offsets = [0, 0], sizes = [8, 1], strides = [1, 1]} : vector<8x128xf32> to vector<8x1xf32>
      %181 = tpu.reciprocal %180 {approx = true} : vector<8x1xf32> -> vector<8x1xf32>
      %c0_134 = arith.constant 0 : index
      %c0_135 = arith.constant 0 : index
      %c0_136 = arith.constant 0 : index
      %182 = vector.load %arg9[%c0_134, %c0_135, %c0_136] : memref<4x8x8xf32, #tpu.memory_space<vmem>>, vector<1x8x8xf32>
      %183 = vector.shape_cast %182 : vector<1x8x8xf32> to vector<8x8xf32>
      %184 = vector.broadcast %181 : vector<8x1xf32> to vector<8x8xf32>
      %185 = arith.mulf %183, %184 : vector<8x8xf32>
      %186 = arith.truncf %185 : vector<8x8xf32> to vector<8x8xbf16>
      %c0_137 = arith.constant 0 : index
      %c0_138 = arith.constant 0 : index
      %c0_139 = arith.constant 0 : index
      %187 = vector.load %arg6[%c0_137, %c0_138, %c0_139] : memref<1x8x32xbf16, #tpu.memory_space<vmem>>, vector<1x8x8xbf16>
      %188 = vector.shape_cast %187 : vector<1x8x8xbf16> to vector<8x8xbf16>
      %189 = vector.shape_cast %186 : vector<8x8xbf16> to vector<1x8x8xbf16>
      tpu.vector_store %arg6[%c0_137, %c0_138, %c0_139], %189 {strides = array<i32>} : memref<1x8x32xbf16, #tpu.memory_space<vmem>>, vector<1x8x8xbf16>,
      %c1_140 = arith.constant 1 : index
      %c0_141 = arith.constant 0 : index
      %c0_142 = arith.constant 0 : index
      %190 = vector.load %arg8[%c1_140, %c0_141, %c0_142] : memref<4x8x128xf32, #tpu.memory_space<vmem>>, vector<1x8x128xf32>
      %191 = vector.shape_cast %190 : vector<1x8x128xf32> to vector<8x128xf32>
      %192 = vector.extract_strided_slice %191 {offsets = [0, 0], sizes = [8, 1], strides = [1, 1]} : vector<8x128xf32> to vector<8x1xf32>
      %193 = tpu.reciprocal %192 {approx = true} : vector<8x1xf32> -> vector<8x1xf32>
      %c1_143 = arith.constant 1 : index
      %c0_144 = arith.constant 0 : index
      %c0_145 = arith.constant 0 : index
      %194 = vector.load %arg9[%c1_143, %c0_144, %c0_145] : memref<4x8x8xf32, #tpu.memory_space<vmem>>, vector<1x8x8xf32>
      %195 = vector.shape_cast %194 : vector<1x8x8xf32> to vector<8x8xf32>
      %196 = vector.broadcast %193 : vector<8x1xf32> to vector<8x8xf32>
      %197 = arith.mulf %195, %196 : vector<8x8xf32>
      %198 = arith.truncf %197 : vector<8x8xf32> to vector<8x8xbf16>
      %c0_146 = arith.constant 0 : index
      %c0_147 = arith.constant 0 : index
      %c8_148 = arith.constant 8 : index
      %199 = vector.load %arg6[%c0_146, %c0_147, %c8_148] : memref<1x8x32xbf16, #tpu.memory_space<vmem>>, vector<1x8x8xbf16>
      %200 = vector.shape_cast %199 : vector<1x8x8xbf16> to vector<8x8xbf16>
      %201 = vector.shape_cast %198 : vector<8x8xbf16> to vector<1x8x8xbf16>
      tpu.vector_store %arg6[%c0_146, %c0_147, %c8_148], %201 {strides = array<i32>} : memref<1x8x32xbf16, #tpu.memory_space<vmem>>, vector<1x8x8xbf16>,
      %c2_149 = arith.constant 2 : index
      %c0_150 = arith.constant 0 : index
      %c0_151 = arith.constant 0 : index
      %202 = vector.load %arg8[%c2_149, %c0_150, %c0_151] : memref<4x8x128xf32, #tpu.memory_space<vmem>>, vector<1x8x128xf32>
      %203 = vector.shape_cast %202 : vector<1x8x128xf32> to vector<8x128xf32>
      %204 = vector.extract_strided_slice %203 {offsets = [0, 0], sizes = [8, 1], strides = [1, 1]} : vector<8x128xf32> to vector<8x1xf32>
      %205 = tpu.reciprocal %204 {approx = true} : vector<8x1xf32> -> vector<8x1xf32>
      %c2_152 = arith.constant 2 : index
      %c0_153 = arith.constant 0 : index
      %c0_154 = arith.constant 0 : index
      %206 = vector.load %arg9[%c2_152, %c0_153, %c0_154] : memref<4x8x8xf32, #tpu.memory_space<vmem>>, vector<1x8x8xf32>
      %207 = vector.shape_cast %206 : vector<1x8x8xf32> to vector<8x8xf32>
      %208 = vector.broadcast %205 : vector<8x1xf32> to vector<8x8xf32>
      %209 = arith.mulf %207, %208 : vector<8x8xf32>
      %210 = arith.truncf %209 : vector<8x8xf32> to vector<8x8xbf16>
      %c0_155 = arith.constant 0 : index
      %c0_156 = arith.constant 0 : index
      %c16_157 = arith.constant 16 : index
      %211 = vector.load %arg6[%c0_155, %c0_156, %c16_157] : memref<1x8x32xbf16, #tpu.memory_space<vmem>>, vector<1x8x8xbf16>
      %212 = vector.shape_cast %211 : vector<1x8x8xbf16> to vector<8x8xbf16>
      %213 = vector.shape_cast %210 : vector<8x8xbf16> to vector<1x8x8xbf16>
      tpu.vector_store %arg6[%c0_155, %c0_156, %c16_157], %213 {strides = array<i32>} : memref<1x8x32xbf16, #tpu.memory_space<vmem>>, vector<1x8x8xbf16>,
      %c3_158 = arith.constant 3 : index
      %c0_159 = arith.constant 0 : index
      %c0_160 = arith.constant 0 : index
      %214 = vector.load %arg8[%c3_158, %c0_159, %c0_160] : memref<4x8x128xf32, #tpu.memory_space<vmem>>, vector<1x8x128xf32>
      %215 = vector.shape_cast %214 : vector<1x8x128xf32> to vector<8x128xf32>
      %216 = vector.extract_strided_slice %215 {offsets = [0, 0], sizes = [8, 1], strides = [1, 1]} : vector<8x128xf32> to vector<8x1xf32>
      %217 = tpu.reciprocal %216 {approx = true} : vector<8x1xf32> -> vector<8x1xf32>
      %c3_161 = arith.constant 3 : index
      %c0_162 = arith.constant 0 : index
      %c0_163 = arith.constant 0 : index
      %218 = vector.load %arg9[%c3_161, %c0_162, %c0_163] : memref<4x8x8xf32, #tpu.memory_space<vmem>>, vector<1x8x8xf32>
      %219 = vector.shape_cast %218 : vector<1x8x8xf32> to vector<8x8xf32>
      %220 = vector.broadcast %217 : vector<8x1xf32> to vector<8x8xf32>
      %221 = arith.mulf %219, %220 : vector<8x8xf32>
      %222 = arith.truncf %221 : vector<8x8xf32> to vector<8x8xbf16>
      %c0_164 = arith.constant 0 : index
      %c0_165 = arith.constant 0 : index
      %c24_166 = arith.constant 24 : index
      %223 = vector.load %arg6[%c0_164, %c0_165, %c24_166] : memref<1x8x32xbf16, #tpu.memory_space<vmem>>, vector<1x8x8xbf16>
      %224 = vector.shape_cast %223 : vector<1x8x8xbf16> to vector<8x8xbf16>
      %225 = vector.shape_cast %222 : vector<8x8xbf16> to vector<1x8x8xbf16>
      tpu.vector_store %arg6[%c0_164, %c0_165, %c24_166], %225 {strides = array<i32>} : memref<1x8x32xbf16, #tpu.memory_space<vmem>>, vector<1x8x8xbf16>,
    } else {
    }
    return
  }
  func.func @transform_0(%arg0: i32, %arg1: i32, %arg2: i32) -> (i32, i32, i32, i32) {
    %c0_i32 = arith.constant 0 : i32
    %c0_i32_0 = arith.constant 0 : i32
    %c0_i32_1 = arith.constant 0 : i32
    return %c0_i32, %arg0, %arg1, %c0_i32_0 : i32, i32, i32, i32
  }
  func.func @transform_1(%arg0: i32, %arg1: i32, %arg2: i32) -> (i32, i32, i32, i32) {
    %c1_i32 = arith.constant 1 : i32
    %c0_i32 = arith.constant 0 : i32
    %c0_i32_0 = arith.constant 0 : i32
    return %c1_i32, %arg0, %arg2, %c0_i32 : i32, i32, i32, i32
  }
  func.func @transform_2(%arg0: i32, %arg1: i32, %arg2: i32) -> (i32, i32, i32, i32) {
    %c2_i32 = arith.constant 2 : i32
    %c0_i32 = arith.constant 0 : i32
    %c0_i32_0 = arith.constant 0 : i32
    return %c2_i32, %arg0, %arg2, %c0_i32 : i32, i32, i32, i32
  }
  func.func @transform_3(%arg0: i32, %arg1: i32, %arg2: i32) -> (i32, i32, i32) {
    %c0_i32 = arith.constant 0 : i32
    %c0_i32_0 = arith.constant 0 : i32
    return %arg0, %arg1, %c0_i32 : i32, i32, i32
  }
}

</mosaic_0001>

<llo_original>
// kernel: attention_forward.5
$region0: #{attention_forward.5}
  #allocation0 [shape = 'u32[]', space=smem, size = 0x4, offset = 0x4, fixed_abs, tag = 'smem constant byte address 0x4 - core index']
  #allocation1 [shape = 'u32[72,128]{1,0:T(1,128)}', space=vmem, size = 0x9000, scoped, tag = 'internal scratch']
  %s0 = inlined_call_operand.vmem [shape: bf16[16,32], index: 0, kind: input, shape index: {}]
  %s1 = inlined_call_operand.vmem [shape: bf16[32,32], index: 1, kind: input, shape index: {}]
  %s2 = inlined_call_operand.vmem [shape: f32[1,32], index: 2, kind: input, shape index: {}]
  %s3 = inlined_call_operand.hbm [shape: f32[16,32], index: 3, kind: output, shape index: {}]
  %s4 = sld [smem:[#allocation0]]
  $region22: #{attention_forward.5} parent=0
    _
  %s6 = ssub.s32 1, %s4
  %s7 = scalar_select 0, %s6, %s4
  $region1: #{attention_forward.5} parent=0
    #allocation2 [shape = 'u8[8192]{0}', space=vmem, size = 0x2000, scoped, tag = 'output window, operand 0, single buffered']
    #allocation3 [shape = 's32[1]{0}', space=sflag, size = 0x4, scoped, tag = 'scoped memory for attention_forward.5']
    %8 = vsyncpa [#allocation3], 0
    // Predicated region
    $region2: #{attention_forward.5} parent=1 // pred_check
      _
    $region3: #{attention_forward.5} parent=1 // pred_check_branch
      %10 = sbr.rel (0) target = $region5
    $region4: #{attention_forward.5} parent=1 // pred_region
      _
    $region5: #{attention_forward.5} parent=1 // pred_fallthru
      _
    // Predicated region
    $region6: #{attention_forward.5} parent=1 // pred_check
      _
    $region7: #{attention_forward.5} parent=1 // pred_check_branch
      %12 = sbr.rel (0) target = $region9
    $region8: #{attention_forward.5} parent=1 // pred_region
      _
    $region9: #{attention_forward.5} parent=1 // pred_fallthru
      _
    // Predicated region
    $region10: #{attention_forward.5} parent=1 // pred_check
      _
    $region11: #{attention_forward.5} parent=1 // pred_check_branch
      %14 = sbr.rel (0) target = $region13
    $region12: #{attention_forward.5} parent=1 // pred_region
      _
    $region13: #{attention_forward.5} parent=1 // pred_fallthru
      _
    %v16 = vld [vmem:[%s0] sm:$0xf]
    %v17 = vld [vmem:[%s0 + $0x4] sm:$0xf]
    %v18 = vld [vmem:[%s1] sm:$0xf]
    %v19 = vld [vmem:[%s1 + $0x4] sm:$0xf]
    %v20 = vld [vmem:[%s1 + $0x8] sm:$0xf]
    %v21 = vld [vmem:[%s1 + $0xc] sm:$0xf]
    %v22 = vld [vmem:[%s2] sm:$0x1]
    %v24 = vperm.slane %v22, 0
    %v28 = vunpack.c.l.b16 %v16
    %v29 = vunpack.c.l.b16 %v17
    %v30 = vpack.c.b16 %v29, %v28
    %v35 = vunpack.c.l.b16 %v18
    %v36 = vunpack.c.l.b16 %v19
    %v37 = vunpack.c.l.b16 %v20
    %v38 = vunpack.c.l.b16 %v21
    %v39 = vpack.c.b16 %v36, %v35
    %v40 = vpack.c.b16 %v38, %v37
    %vm41 = vcmask 261120
    %v43 = vsel %vm41, %v30, 0
    %v46 = vsel %vm41, %v39, 0
    %v49 = vsel %vm41, %v40, 0
    %51 = vmatpush.bf16.xpose.msra.mxu0 0
    %52 = vmatpush.bf16.xpose.msra.mxu0 0
    %53 = vmatpush.bf16.xpose.msra.mxu0 0
    %54 = vmatpush.bf16.xpose.msra.mxu0 0
    %55 = vmatpush.bf16.xpose.msra.mxu0 0
    %56 = vmatpush.bf16.xpose.msra.mxu0 0
    %57 = vmatpush.bf16.xpose.msra.mxu0 %v49
    %58 = vmatpush.bf16.xpose.msra.mxu0 %v46
    %59 = vmatmul.bf16.gmra.mxu0 %v43
    %v60 = vpop.f32.mrf.mxu0
    %v61 = vadd.f32 %v24, %v60
    %v62 = vpop.f32.mrf.mxu0
    %v63 = vadd.f32 %v24, %v62
    %64 = vdwg.mxu0
    %65 = vst.msk [vmem:[#allocation2] sm:$0xff] %vm41, %v61
    %66 = vst.msk [vmem:[#allocation2 + $0x8] sm:$0xff] %vm41, %v63
    // Predicated region
    $region14: #{attention_forward.5} parent=1 // pred_check
      _
    $region15: #{attention_forward.5} parent=1 // pred_check_branch
      %68 = sbr.rel (0) target = $region17
    $region16: #{attention_forward.5} parent=1 // pred_region
      %70 = vsyncadd [#allocation3], 0
      %s71 = sshll.u32 [#allocation2], 4
      %s72 = int_to_ptr.vmem [resolvable:$true] %s71
      %s73 = sshll.u32 %s3, 4
      %s74 = int_to_ptr.hbm [resolvable:$true] %s73
      %79 = dma.vmem_to_hbm [thread:$0]  %s72, 256, %s74, [#allocation3], 128, 128, 8
    $region17: #{attention_forward.5} parent=1 // pred_fallthru
      _
    // Predicated region
    $region18: #{attention_forward.5} parent=1 // pred_check
      _
    $region19: #{attention_forward.5} parent=1 // pred_check_branch
      %81 = sbr.rel (0) target = $region21
    $region20: #{attention_forward.5} parent=1 // pred_region
      %83 = dma.done [#allocation3], 256
    $region21: #{attention_forward.5} parent=1 // pred_fallthru
      _
    %84 = vsyncpa [#allocation3], 1

// kernel: attention_forward.3
$region0: #{attention_forward.3}
  #allocation0 [shape = 'u32[]', space=smem, size = 0x4, offset = 0x4, fixed_abs, tag = 'smem constant byte address 0x4 - core index']
  #allocation1 [shape = 'u32[72,128]{1,0:T(1,128)}', space=vmem, size = 0x9000, scoped, tag = 'internal scratch']
  %s0 = inlined_call_operand.vmem [shape: bf16[16,32], index: 0, kind: input, shape index: {}]
  %s1 = inlined_call_operand.vmem [shape: bf16[96,32], index: 1, kind: input, shape index: {}]
  %s2 = inlined_call_operand.vmem [shape: bf16[3,16,32], index: 2, kind: output, shape index: {}]
  %s3 = sld [smem:[#allocation0]]
  $region41: #{attention_forward.3} parent=0
    _
  %s5 = ssub.s32 1, %s3
  %s6 = scalar_select 0, %s5, %s3
  loop: start=0, step=1, limit=5
  $region2: #{attention_forward.3} parent=0 // loop_pre_header
    _
  $region3: #{attention_forward.3} parent=0 // loop_header
    %s8 = sphi 0, %s12
    %p9 = scmp.ge.s32.totalorder %s8, 5
    %s15 = sphi 0, %s27
    %s16 = sphi 0, %s23
    %s17 = sphi 0, %s15
    %s18 = sphi 0, %s16
    %s19 = sphi 0, %s17
    %s20 = sphi 0, %s18
    %s30 = sphi 0, %s32
    %s33 = sphi 0, %s30
    %s34 = sphi 0, %s33
    %s50 = sphi 0, %s34
    %s56 = sphi 0, %s58
    %s59 = sphi 0, %s56
    %s60 = sphi 0, %s59
    %s76 = sphi 0, %s60
    %s84 = sphi 0, %s86
    %s87 = sphi 0, %s84
    %s88 = sphi 0, %s87
    %s104 = sphi 0, %s88
  $region4: #{attention_forward.3} parent=0 // loop_header_branch
    %11 = sbr.rel (%p9) target = $region8
  $region5: #{attention_forward.3} parent=0 // loop_body
    %s13 = ssub.s32 %s8, 1
    %s14 = ssub.s32 %s8, 2
    %s21 = sadd.s32 1, %s16
    %p22 = scmp.ge.s32.totalorder %s21, 1
    %s23 = scalar_select %p22, 0, %s21
    %s24 = sadd.s32 1, %s15
    %s25 = scalar_select %p22, %s24, %s15
    %p26 = scmp.ge.s32.totalorder %s25, 3
    %s27 = scalar_select %p26, 0, %s25
    %s28 = ssub.s32 %s16, %s23
    %p29 = scmp.eq.s32.totalorder %s28, 0
    %s31 = sadd.s32 %s30, 1
    %s32 = scalar_select %p29, %s30, %s31
    %p35 = pneg %p29
    %p36 = scmp.eq.s32.totalorder %s8, 2
    %p37 = por %p35, %p36
    %p38 = scmp.ne.s32.totalorder %s30, %s33
    %p39 = scmp.eq.s32.totalorder %s8, 0
    %p40 = por %p38, %p39
    %p41 = scmp.ne.s32.totalorder %s30, %s33
    %p42 = scmp.eq.s32.totalorder %s13, 2
    %p43 = por %p41, %p42
    %p44 = scmp.ne.s32.totalorder %s33, %s34
    %p45 = scmp.eq.s32.totalorder %s13, 0
    %p46 = por %p44, %p45
    %p47 = scmp.ne.s32.totalorder %s33, %s34
    %p48 = scmp.eq.s32.totalorder %s14, 2
    %p49 = por %p47, %p48
    %p51 = scmp.ne.s32.totalorder %s34, %s50
    %p52 = scmp.eq.s32.totalorder %s14, 0
    %p53 = por %p51, %p52
    %s54 = ssub.s32 %s15, %s27
    %p55 = scmp.eq.s32.totalorder %s54, 0
    %s57 = sadd.s32 %s56, 1
    %s58 = scalar_select %p55, %s56, %s57
    %p61 = pneg %p55
    %p62 = scmp.eq.s32.totalorder %s8, 2
    %p63 = por %p61, %p62
    %p64 = scmp.ne.s32.totalorder %s56, %s59
    %p65 = scmp.eq.s32.totalorder %s8, 0
    %p66 = por %p64, %p65
    %p67 = scmp.ne.s32.totalorder %s56, %s59
    %p68 = scmp.eq.s32.totalorder %s13, 2
    %p69 = por %p67, %p68
    %p70 = scmp.ne.s32.totalorder %s59, %s60
    %p71 = scmp.eq.s32.totalorder %s13, 0
    %p72 = por %p70, %p71
    %p73 = scmp.ne.s32.totalorder %s59, %s60
    %p74 = scmp.eq.s32.totalorder %s14, 2
    %p75 = por %p73, %p74
    %p77 = scmp.ne.s32.totalorder %s60, %s76
    %p78 = scmp.eq.s32.totalorder %s14, 0
    %p79 = por %p77, %p78
    %s80 = ssub.s32 %s15, %s27
    %s81 = ssub.s32 %s16, %s23
    %s82 = sor.u32 %s80, %s81
    %p83 = scmp.eq.s32.totalorder %s82, 0
    %s85 = sadd.s32 %s84, 1
    %s86 = scalar_select %p83, %s84, %s85
    %p89 = pneg %p83
    %p90 = scmp.eq.s32.totalorder %s8, 2
    %p91 = por %p89, %p90
    %p92 = scmp.ne.s32.totalorder %s84, %s87
    %p93 = scmp.eq.s32.totalorder %s8, 0
    %p94 = por %p92, %p93
    %p95 = scmp.ne.s32.totalorder %s84, %s87
    %p96 = scmp.eq.s32.totalorder %s13, 2
    %p97 = por %p95, %p96
    %p98 = scmp.ne.s32.totalorder %s87, %s88
    %p99 = scmp.eq.s32.totalorder %s13, 0
    %p100 = por %p98, %p99
    %p101 = scmp.ne.s32.totalorder %s87, %s88
    %p102 = scmp.eq.s32.totalorder %s14, 2
    %p103 = por %p101, %p102
    %p105 = scmp.ne.s32.totalorder %s88, %s104
    %p106 = scmp.eq.s32.totalorder %s14, 0
    %p107 = por %p105, %p106
    %p108 = scmp.le.s32.totalorder 1, %s8
    %p109 = scmp.lt.s32.totalorder %s8, 4
    %p110 = pnand %p108, %p109
    %p111 = pneg %p110
    // Predicated region
    $region9: #{attention_forward.3} parent=5 // pred_check
      _
    $region10: #{attention_forward.3} parent=5 // pred_check_branch
      %113 = sbr.rel (%p110) target = $region12
    $region11: #{attention_forward.3} parent=5 // pred_region
      %s114 = ssub.s32 %s8, 1
      // Predicated region
      $region13: #{attention_forward.3} parent=11 // pred_check
        %p115 = pneg %p46
      $region14: #{attention_forward.3} parent=11 // pred_check_branch
        %117 = sbr.rel (%p115) target = $region16
      $region15: #{attention_forward.3} parent=11 // pred_region
        %s118 = smul.u32 2, %s18
        %p119 = scmp.lt.s32.totalorder %s118, 1
        %s120 = scalar_select %p119, %s118, 1
        %s121 = smul.addr %s120, 4
        %s122 = scalar_lea.vmem %s0, %s121
        %s123 = smul.u32 2, %s18
      $region16: #{attention_forward.3} parent=11 // pred_fallthru
        _
    $region12: #{attention_forward.3} parent=5 // pred_fallthru
      _
    %p124 = scmp.lt.s32.totalorder %s8, 3
    // Predicated region
    $region17: #{attention_forward.3} parent=5 // pred_check
      %p125 = pneg %p124
    $region18: #{attention_forward.3} parent=5 // pred_check_branch
      %127 = sbr.rel (%p125) target = $region20
    $region19: #{attention_forward.3} parent=5 // pred_region
      // Predicated region
      $region21: #{attention_forward.3} parent=19 // pred_check
        %p128 = pneg %p66
      $region22: #{attention_forward.3} parent=19 // pred_check_branch
        %130 = sbr.rel (%p128) target = $region24
      $region23: #{attention_forward.3} parent=19 // pred_region
        %s131 = smul.u32 4, %s15
        %p132 = scmp.lt.s32.totalorder %s131, 11
        %s133 = scalar_select %p132, %s131, 11
        %s134 = smul.addr %s133, 4
        %s135 = scalar_lea.vmem %s1, %s134
        %s136 = smul.u32 4, %s15
      $region24: #{attention_forward.3} parent=19 // pred_fallthru
        _
    $region20: #{attention_forward.3} parent=5 // pred_fallthru
      _
    %p137 = scmp.le.s32.totalorder 1, %s8
    %p138 = scmp.lt.s32.totalorder %s8, 4
    %p139 = pnand %p137, %p138
    %p140 = pneg %p139
    // Predicated region
    $region25: #{attention_forward.3} parent=5 // pred_check
      _
    $region26: #{attention_forward.3} parent=5 // pred_check_branch
      %142 = sbr.rel (%p139) target = $region28
    $region27: #{attention_forward.3} parent=5 // pred_region
      %s143 = ssub.s32 %s8, 1
      %s144 = smul.u32 2, %s18
      %p145 = scmp.lt.s32.totalorder %s144, 1
      %s146 = scalar_select %p145, %s144, 1
      %s147 = smul.addr %s146, 4
      %s148 = scalar_lea.vmem %s0, %s147
      %p149 = pneg %p46
      %p150 = pneg %p43
      %s151 = smul.u32 4, %s17
      %p152 = scmp.lt.s32.totalorder %s151, 11
      %s153 = scalar_select %p152, %s151, 11
      %s154 = smul.addr %s153, 4
      %s155 = scalar_lea.vmem %s1, %s154
      %p156 = pneg %p72
      %p157 = pneg %p69
      %p158 = pneg %p100
      %p159 = pneg %p97
      %s160 = smul.u32 2, %s18
      %p161 = scmp.lt.s32.totalorder %s17, 2
      %s162 = scalar_select %p161, %s17, 2
      %p163 = scmp.lt.s32.totalorder %s160, 1
      %s164 = scalar_select %p163, %s160, 1
      %s165 = smul.addr %s162, 2
      %s166 = sadd.s32 %s164, %s165
      %s167 = smul.addr %s166, 4
      %s168 = scalar_lea.vmem %s2, %s167
      %s169 = smul.u32 2, %s18
      %p170 = scmp.lt.s32.totalorder %s169, 1
      %s171 = scalar_select %p170, %s169, 1
      %s172 = smul.addr %s171, 4
      %s173 = scalar_lea.vmem %s0, %s172
      %s174 = smul.u32 2, %s18
      %s175 = smul.u32 4, %s17
      %p176 = scmp.lt.s32.totalorder %s175, 11
      %s177 = scalar_select %p176, %s175, 11
      %s178 = smul.addr %s177, 4
      %s179 = scalar_lea.vmem %s1, %s178
      %s180 = smul.u32 4, %s17
      %s181 = smul.u32 2, %s18
      %p182 = scmp.lt.s32.totalorder %s17, 2
      %s183 = scalar_select %p182, %s17, 2
      %p184 = scmp.lt.s32.totalorder %s181, 1
      %s185 = scalar_select %p184, %s181, 1
      %s186 = smul.addr %s183, 2
      %s187 = sadd.s32 %s185, %s186
      %s188 = smul.addr %s187, 4
      %s189 = scalar_lea.vmem %s2, %s188
      %s190 = smul.u32 2, %s18
      %v192 = vld [vmem:[%s173] sm:$0xf]
      %v193 = vld [vmem:[%s173 + $0x4] sm:$0xf]
      %v194 = vld [vmem:[%s179] sm:$0xf]
      %v195 = vld [vmem:[%s179 + $0x4] sm:$0xf]
      %v196 = vld [vmem:[%s179 + $0x8] sm:$0xf]
      %v197 = vld [vmem:[%s179 + $0xc] sm:$0xf]
      %v200 = vunpack.c.l.b16 %v192
      %v201 = vunpack.c.l.b16 %v193
      %v202 = vpack.c.b16 %v201, %v200
      %v207 = vunpack.c.l.b16 %v194
      %v208 = vunpack.c.l.b16 %v195
      %v209 = vunpack.c.l.b16 %v196
      %v210 = vunpack.c.l.b16 %v197
      %v211 = vpack.c.b16 %v208, %v207
      %v212 = vpack.c.b16 %v210, %v209
      %vm213 = vcmask 261120
      %v215 = vsel %vm213, %v202, 0
      %v218 = vsel %vm213, %v211, 0
      %v221 = vsel %vm213, %v212, 0
      %223 = vmatpush.bf16.xpose.msra.mxu0 0
      %224 = vmatpush.bf16.xpose.msra.mxu0 0
      %225 = vmatpush.bf16.xpose.msra.mxu0 0
      %226 = vmatpush.bf16.xpose.msra.mxu0 0
      %227 = vmatpush.bf16.xpose.msra.mxu0 0
      %228 = vmatpush.bf16.xpose.msra.mxu0 0
      %229 = vmatpush.bf16.xpose.msra.mxu0 %v221
      %230 = vmatpush.bf16.xpose.msra.mxu0 %v218
      %231 = vmatmul.bf16.gmra.mxu0 %v215
      %v232 = vpop.f32.mrf.mxu0
      %v233 = vadd.f32 0.0, %v232
      %v234 = vpop.f32.mrf.mxu0
      %v235 = vadd.f32 0.0, %v234
      %236 = vdwg.mxu0
      %v237 = vpack.c.bf16 %v233, %v233
      %v238 = vpack.c.bf16 %v235, %v235
      %vm239 = vcmask 257024
      %240 = vst.msk [vmem:[%s189] sm:$0xf] %vm239, %v237
      %241 = vst.msk [vmem:[%s189 + $0x4] sm:$0xf] %vm239, %v238
      %s242 = smul.u32 2, %s18
      %p243 = scmp.lt.s32.totalorder %s17, 2
      %s244 = scalar_select %p243, %s17, 2
      %p245 = scmp.lt.s32.totalorder %s242, 1
      %s246 = scalar_select %p245, %s242, 1
      %s247 = smul.addr %s244, 2
      %s248 = sadd.s32 %s246, %s247
      %s249 = smul.addr %s248, 4
      %s250 = scalar_lea.vmem %s2, %s249
      // Predicated region
      $region29: #{attention_forward.3} parent=27 // pred_check
        %p251 = pneg %p97
      $region30: #{attention_forward.3} parent=27 // pred_check_branch
        %253 = sbr.rel (%p251) target = $region32
      $region31: #{attention_forward.3} parent=27 // pred_region
        %s254 = smul.u32 2, %s18
      $region32: #{attention_forward.3} parent=27 // pred_fallthru
        _
    $region28: #{attention_forward.3} parent=5 // pred_fallthru
      _
    %p255 = scmp.le.s32.totalorder 2, %s8
    // Predicated region
    $region33: #{attention_forward.3} parent=5 // pred_check
      %p256 = pneg %p255
    $region34: #{attention_forward.3} parent=5 // pred_check_branch
      %258 = sbr.rel (%p256) target = $region36
    $region35: #{attention_forward.3} parent=5 // pred_region
      %s259 = ssub.s32 %s8, 2
      // Predicated region
      $region37: #{attention_forward.3} parent=35 // pred_check
        %p260 = pneg %p103
      $region38: #{attention_forward.3} parent=35 // pred_check_branch
        %262 = sbr.rel (%p260) target = $region40
      $region39: #{attention_forward.3} parent=35 // pred_region
        %s263 = smul.u32 2, %s20
        %p264 = scmp.lt.s32.totalorder %s19, 2
        %s265 = scalar_select %p264, %s19, 2
        %p266 = scmp.lt.s32.totalorder %s263, 1
        %s267 = scalar_select %p266, %s263, 1
        %s268 = smul.addr %s265, 2
        %s269 = sadd.s32 %s267, %s268
        %s270 = smul.addr %s269, 4
        %s271 = scalar_lea.vmem %s2, %s270
      $region40: #{attention_forward.3} parent=35 // pred_fallthru
        _
    $region36: #{attention_forward.3} parent=5 // pred_fallthru
      _
  $region6: #{attention_forward.3} parent=0 // loop_footer
    %s12 = sadd.s32 1, %s8
  $region7: #{attention_forward.3} parent=0 // loop_footer_branch
    %7 = sbr.rel target = $region3
  $region8: #{attention_forward.3} parent=0 // loop_exit
    _

// kernel: attention_forward.4
$region0: #{attention_forward.4}
  #allocation0 [shape = 'u32[]', space=smem, size = 0x4, offset = 0x4, fixed_abs, tag = 'smem constant byte address 0x4 - core index']
  #allocation1 [shape = 'u32[72,128]{1,0:T(1,128)}', space=vmem, size = 0x9000, scoped, tag = 'internal scratch']
  #allocation2 [shape = 'f32[4,8,128]{2,1,0:T(8,128)}', space=vmem, size = 0x4000, scoped, tag = 'scratch operand']
  #allocation3 [shape = 'f32[4,8,128]{2,1,0:T(8,128)}', space=vmem, size = 0x4000, scoped, tag = 'scratch operand']
  #allocation4 [shape = 'f32[4,8,8]{2,1,0:T(8,128)}', space=vmem, size = 0x4000, scoped, tag = 'scratch operand']
  %s0 = inlined_call_operand.vmem [shape: bf16[3,2,8,32], index: 0, kind: input, shape index: {}, may-alias: {0,1,2}]
  %s1 = inlined_call_operand.vmem [shape: bf16[3,2,8,32], index: 1, kind: input, shape index: {}, may-alias: {0,1,2}]
  %s2 = inlined_call_operand.vmem [shape: bf16[3,2,8,32], index: 2, kind: input, shape index: {}, may-alias: {0,1,2}]
  %s3 = inlined_call_operand.vmem [shape: bf16[2,8,32], index: 3, kind: output, shape index: {}]
  %s4 = sld [smem:[#allocation0]]
  $region53: #{attention_forward.4} parent=0
    _
  %s6 = ssub.s32 1, %s4
  %s7 = scalar_select 0, %s6, %s4
  loop: start=0, step=1, limit=4
  $region2: #{attention_forward.4} parent=0 // loop_pre_header
    _
  $region3: #{attention_forward.4} parent=0 // loop_header
    %s9 = sphi 0, %s13
    %p10 = scmp.ge.s32.totalorder %s9, 4
    %s16 = sphi 0, %s35
    %s17 = sphi 0, %s31
    %s18 = sphi 0, %s27
    %s19 = sphi 0, %s16
    %s20 = sphi 0, %s17
    %s21 = sphi 0, %s18
    %s22 = sphi 0, %s19
    %s23 = sphi 0, %s20
    %s24 = sphi 0, %s21
    %s40 = sphi 0, %s42
    %s43 = sphi 0, %s40
    %s44 = sphi 0, %s43
    %s60 = sphi 0, %s44
    %s68 = sphi 0, %s70
    %s71 = sphi 0, %s68
    %s72 = sphi 0, %s71
    %s88 = sphi 0, %s72
    %s96 = sphi 0, %s98
    %s99 = sphi 0, %s96
    %s100 = sphi 0, %s99
    %s116 = sphi 0, %s100
    %s124 = sphi 0, %s126
    %s127 = sphi 0, %s124
    %s128 = sphi 0, %s127
    %s144 = sphi 0, %s128
  $region4: #{attention_forward.4} parent=0 // loop_header_branch
    %12 = sbr.rel (%p10) target = $region8
  $region5: #{attention_forward.4} parent=0 // loop_body
    %s14 = ssub.s32 %s9, 1
    %s15 = ssub.s32 %s9, 2
    %s25 = sadd.s32 1, %s18
    %p26 = scmp.ge.s32.totalorder %s25, 1
    %s27 = scalar_select %p26, 0, %s25
    %s28 = sadd.s32 1, %s17
    %s29 = scalar_select %p26, %s28, %s17
    %p30 = scmp.ge.s32.totalorder %s29, 1
    %s31 = scalar_select %p30, 0, %s29
    %s32 = sadd.s32 1, %s16
    %s33 = scalar_select %p30, %s32, %s16
    %p34 = scmp.ge.s32.totalorder %s33, 2
    %s35 = scalar_select %p34, 0, %s33
    %s36 = ssub.s32 %s16, %s35
    %s37 = ssub.s32 %s17, %s31
    %s38 = sor.u32 %s36, %s37
    %p39 = scmp.eq.s32.totalorder %s38, 0
    %s41 = sadd.s32 %s40, 1
    %s42 = scalar_select %p39, %s40, %s41
    %p45 = pneg %p39
    %p46 = scmp.eq.s32.totalorder %s9, 1
    %p47 = por %p45, %p46
    %p48 = scmp.ne.s32.totalorder %s40, %s43
    %p49 = scmp.eq.s32.totalorder %s9, 0
    %p50 = por %p48, %p49
    %p51 = scmp.ne.s32.totalorder %s40, %s43
    %p52 = scmp.eq.s32.totalorder %s14, 1
    %p53 = por %p51, %p52
    %p54 = scmp.ne.s32.totalorder %s43, %s44
    %p55 = scmp.eq.s32.totalorder %s14, 0
    %p56 = por %p54, %p55
    %p57 = scmp.ne.s32.totalorder %s43, %s44
    %p58 = scmp.eq.s32.totalorder %s15, 1
    %p59 = por %p57, %p58
    %p61 = scmp.ne.s32.totalorder %s44, %s60
    %p62 = scmp.eq.s32.totalorder %s15, 0
    %p63 = por %p61, %p62
    %s64 = ssub.s32 %s16, %s35
    %s65 = ssub.s32 %s18, %s27
    %s66 = sor.u32 %s64, %s65
    %p67 = scmp.eq.s32.totalorder %s66, 0
    %s69 = sadd.s32 %s68, 1
    %s70 = scalar_select %p67, %s68, %s69
    %p73 = pneg %p67
    %p74 = scmp.eq.s32.totalorder %s9, 1
    %p75 = por %p73, %p74
    %p76 = scmp.ne.s32.totalorder %s68, %s71
    %p77 = scmp.eq.s32.totalorder %s9, 0
    %p78 = por %p76, %p77
    %p79 = scmp.ne.s32.totalorder %s68, %s71
    %p80 = scmp.eq.s32.totalorder %s14, 1
    %p81 = por %p79, %p80
    %p82 = scmp.ne.s32.totalorder %s71, %s72
    %p83 = scmp.eq.s32.totalorder %s14, 0
    %p84 = por %p82, %p83
    %p85 = scmp.ne.s32.totalorder %s71, %s72
    %p86 = scmp.eq.s32.totalorder %s15, 1
    %p87 = por %p85, %p86
    %p89 = scmp.ne.s32.totalorder %s72, %s88
    %p90 = scmp.eq.s32.totalorder %s15, 0
    %p91 = por %p89, %p90
    %s92 = ssub.s32 %s16, %s35
    %s93 = ssub.s32 %s18, %s27
    %s94 = sor.u32 %s92, %s93
    %p95 = scmp.eq.s32.totalorder %s94, 0
    %s97 = sadd.s32 %s96, 1
    %s98 = scalar_select %p95, %s96, %s97
    %p101 = pneg %p95
    %p102 = scmp.eq.s32.totalorder %s9, 1
    %p103 = por %p101, %p102
    %p104 = scmp.ne.s32.totalorder %s96, %s99
    %p105 = scmp.eq.s32.totalorder %s9, 0
    %p106 = por %p104, %p105
    %p107 = scmp.ne.s32.totalorder %s96, %s99
    %p108 = scmp.eq.s32.totalorder %s14, 1
    %p109 = por %p107, %p108
    %p110 = scmp.ne.s32.totalorder %s99, %s100
    %p111 = scmp.eq.s32.totalorder %s14, 0
    %p112 = por %p110, %p111
    %p113 = scmp.ne.s32.totalorder %s99, %s100
    %p114 = scmp.eq.s32.totalorder %s15, 1
    %p115 = por %p113, %p114
    %p117 = scmp.ne.s32.totalorder %s100, %s116
    %p118 = scmp.eq.s32.totalorder %s15, 0
    %p119 = por %p117, %p118
    %s120 = ssub.s32 %s16, %s35
    %s121 = ssub.s32 %s17, %s31
    %s122 = sor.u32 %s120, %s121
    %p123 = scmp.eq.s32.totalorder %s122, 0
    %s125 = sadd.s32 %s124, 1
    %s126 = scalar_select %p123, %s124, %s125
    %p129 = pneg %p123
    %p130 = scmp.eq.s32.totalorder %s9, 1
    %p131 = por %p129, %p130
    %p132 = scmp.ne.s32.totalorder %s124, %s127
    %p133 = scmp.eq.s32.totalorder %s9, 0
    %p134 = por %p132, %p133
    %p135 = scmp.ne.s32.totalorder %s124, %s127
    %p136 = scmp.eq.s32.totalorder %s14, 1
    %p137 = por %p135, %p136
    %p138 = scmp.ne.s32.totalorder %s127, %s128
    %p139 = scmp.eq.s32.totalorder %s14, 0
    %p140 = por %p138, %p139
    %p141 = scmp.ne.s32.totalorder %s127, %s128
    %p142 = scmp.eq.s32.totalorder %s15, 1
    %p143 = por %p141, %p142
    %p145 = scmp.ne.s32.totalorder %s128, %s144
    %p146 = scmp.eq.s32.totalorder %s15, 0
    %p147 = por %p145, %p146
    %p148 = scmp.le.s32.totalorder 1, %s9
    %p149 = scmp.lt.s32.totalorder %s9, 3
    %p150 = pnand %p148, %p149
    %p151 = pneg %p150
    // Predicated region
    $region9: #{attention_forward.4} parent=5 // pred_check
      _
    $region10: #{attention_forward.4} parent=5 // pred_check_branch
      %153 = sbr.rel (%p150) target = $region12
    $region11: #{attention_forward.4} parent=5 // pred_region
      %s154 = ssub.s32 %s9, 1
    $region12: #{attention_forward.4} parent=5 // pred_fallthru
      _
    %p155 = scmp.lt.s32.totalorder %s9, 2
    // Predicated region
    $region13: #{attention_forward.4} parent=5 // pred_check
      %p156 = pneg %p155
    $region14: #{attention_forward.4} parent=5 // pred_check_branch
      %158 = sbr.rel (%p156) target = $region16
    $region15: #{attention_forward.4} parent=5 // pred_region
      // Predicated region
      $region17: #{attention_forward.4} parent=15 // pred_check
        %p159 = pneg %p50
      $region18: #{attention_forward.4} parent=15 // pred_check_branch
        %161 = sbr.rel (%p159) target = $region20
      $region19: #{attention_forward.4} parent=15 // pred_region
        %p162 = scmp.lt.s32.totalorder %s16, 1
        %s163 = scalar_select %p162, %s16, 1
        %p164 = scmp.lt.s32.totalorder %s17, 0
        %s165 = scalar_select %p164, %s17, 0
        %s166 = sadd.s32 %s165, %s163
        %s167 = smul.addr %s166, 4
        %s168 = scalar_lea.vmem %s0, %s167
      $region20: #{attention_forward.4} parent=15 // pred_fallthru
        _
      // Predicated region
      $region21: #{attention_forward.4} parent=15 // pred_check
        %p169 = pneg %p78
      $region22: #{attention_forward.4} parent=15 // pred_check_branch
        %171 = sbr.rel (%p169) target = $region24
      $region23: #{attention_forward.4} parent=15 // pred_region
        %p172 = scmp.lt.s32.totalorder %s16, 1
        %s173 = scalar_select %p172, %s16, 1
        %p174 = scmp.lt.s32.totalorder %s18, 0
        %s175 = scalar_select %p174, %s18, 0
        %s176 = sadd.s32 %s175, %s173
        %s177 = sadd.s32 %s176, 2
        %s178 = smul.addr %s177, 4
        %s179 = scalar_lea.vmem %s1, %s178
      $region24: #{attention_forward.4} parent=15 // pred_fallthru
        _
      // Predicated region
      $region25: #{attention_forward.4} parent=15 // pred_check
        %p180 = pneg %p106
      $region26: #{attention_forward.4} parent=15 // pred_check_branch
        %182 = sbr.rel (%p180) target = $region28
      $region27: #{attention_forward.4} parent=15 // pred_region
        %p183 = scmp.lt.s32.totalorder %s16, 1
        %s184 = scalar_select %p183, %s16, 1
        %p185 = scmp.lt.s32.totalorder %s18, 0
        %s186 = scalar_select %p185, %s18, 0
        %s187 = sadd.s32 %s186, %s184
        %s188 = sadd.s32 %s187, 4
        %s189 = smul.addr %s188, 4
        %s190 = scalar_lea.vmem %s2, %s189
      $region28: #{attention_forward.4} parent=15 // pred_fallthru
        _
    $region16: #{attention_forward.4} parent=5 // pred_fallthru
      _
    %p191 = scmp.le.s32.totalorder 1, %s9
    %p192 = scmp.lt.s32.totalorder %s9, 3
    %p193 = pnand %p191, %p192
    %p194 = pneg %p193
    // Predicated region
    $region29: #{attention_forward.4} parent=5 // pred_check
      _
    $region30: #{attention_forward.4} parent=5 // pred_check_branch
      %196 = sbr.rel (%p193) target = $region32
    $region31: #{attention_forward.4} parent=5 // pred_region
      %s197 = ssub.s32 %s9, 1
      %p198 = scmp.lt.s32.totalorder %s19, 1
      %s199 = scalar_select %p198, %s19, 1
      %p200 = scmp.lt.s32.totalorder %s20, 0
      %s201 = scalar_select %p200, %s20, 0
      %s202 = sadd.s32 %s201, %s199
      %s203 = smul.addr %s202, 4
      %s204 = scalar_lea.vmem %s0, %s203
      %p205 = pneg %p56
      %p206 = pneg %p53
      %p207 = scmp.lt.s32.totalorder %s19, 1
      %s208 = scalar_select %p207, %s19, 1
      %p209 = scmp.lt.s32.totalorder %s21, 0
      %s210 = scalar_select %p209, %s21, 0
      %s211 = sadd.s32 %s210, %s208
      %s212 = sadd.s32 %s211, 2
      %s213 = smul.addr %s212, 4
      %s214 = scalar_lea.vmem %s1, %s213
      %p215 = pneg %p84
      %p216 = pneg %p81
      %p217 = scmp.lt.s32.totalorder %s19, 1
      %s218 = scalar_select %p217, %s19, 1
      %p219 = scmp.lt.s32.totalorder %s21, 0
      %s220 = scalar_select %p219, %s21, 0
      %s221 = sadd.s32 %s220, %s218
      %s222 = sadd.s32 %s221, 4
      %s223 = smul.addr %s222, 4
      %s224 = scalar_lea.vmem %s2, %s223
      %p225 = pneg %p112
      %p226 = pneg %p109
      %p227 = pneg %p140
      %p228 = pneg %p137
      %p229 = scmp.lt.s32.totalorder %s19, 1
      %s230 = scalar_select %p229, %s19, 1
      %p231 = scmp.lt.s32.totalorder %s20, 0
      %s232 = scalar_select %p231, %s20, 0
      %s233 = sadd.s32 %s232, %s230
      %s234 = smul.addr %s233, 4
      %s235 = scalar_lea.vmem %s3, %s234
      %p236 = scmp.lt.s32.totalorder %s19, 1
      %s237 = scalar_select %p236, %s19, 1
      %p238 = scmp.lt.s32.totalorder %s20, 0
      %s239 = scalar_select %p238, %s20, 0
      %s240 = sadd.s32 %s239, %s237
      %s241 = smul.addr %s240, 4
      %s242 = scalar_lea.vmem %s0, %s241
      %p243 = scmp.lt.s32.totalorder %s19, 1
      %s244 = scalar_select %p243, %s19, 1
      %p245 = scmp.lt.s32.totalorder %s21, 0
      %s246 = scalar_select %p245, %s21, 0
      %s247 = sadd.s32 %s246, %s244
      %s248 = sadd.s32 %s247, 2
      %s249 = smul.addr %s248, 4
      %s250 = scalar_lea.vmem %s1, %s249
      %p251 = scmp.lt.s32.totalorder %s19, 1
      %s252 = scalar_select %p251, %s19, 1
      %p253 = scmp.lt.s32.totalorder %s21, 0
      %s254 = scalar_select %p253, %s21, 0
      %s255 = sadd.s32 %s254, %s252
      %s256 = sadd.s32 %s255, 4
      %s257 = smul.addr %s256, 4
      %s258 = scalar_lea.vmem %s2, %s257
      %p259 = scmp.lt.s32.totalorder %s19, 1
      %s260 = scalar_select %p259, %s19, 1
      %p261 = scmp.lt.s32.totalorder %s20, 0
      %s262 = scalar_select %p261, %s20, 0
      %s263 = sadd.s32 %s262, %s260
      %s264 = smul.addr %s263, 4
      %s265 = scalar_lea.vmem %s3, %s264
      %p267 = scmp.eq.s32.totalorder %s21, 0
      // Predicated region
      $region33: #{attention_forward.4} parent=31 // pred_check
        %p268 = pneg %p267
      $region34: #{attention_forward.4} parent=31 // pred_check_branch
        %270 = sbr.rel (%p268) target = $region36
      $region35: #{attention_forward.4} parent=31 // pred_region
        %271 = vst [vmem:[#allocation2] sm:$0xff] -inf
        %272 = vst [vmem:[#allocation2 + $0x8] sm:$0xff] -inf
        %273 = vst [vmem:[#allocation2 + $0x10] sm:$0xff] -inf
        %274 = vst [vmem:[#allocation2 + $0x18] sm:$0xff] -inf
        %275 = vst [vmem:[#allocation3] sm:$0xff] 0.0
        %276 = vst [vmem:[#allocation3 + $0x8] sm:$0xff] 0.0
        %277 = vst [vmem:[#allocation3 + $0x10] sm:$0xff] 0.0
        %278 = vst [vmem:[#allocation3 + $0x18] sm:$0xff] 0.0
        %vm279 = vcmask 64512
        %280 = vst.msk [vmem:[#allocation4] sm:$0xff] %vm279, 0.0
        %281 = vst.msk [vmem:[#allocation4 + $0x8] sm:$0xff] %vm279, 0.0
        %282 = vst.msk [vmem:[#allocation4 + $0x10] sm:$0xff] %vm279, 0.0
        %283 = vst.msk [vmem:[#allocation4 + $0x18] sm:$0xff] %vm279, 0.0
      $region36: #{attention_forward.4} parent=31 // pred_fallthru
        _
      %v284 = vld [vmem:[%s242] sm:$0xf]
      %v285 = vld [vmem:[%s250] sm:$0xf]
      %vm286 = vcmask 64512
      %v288 = vsel %vm286, %v284, 0
      %v291 = vsel %vm286, %v285, 0
      %293 = vmatpush.bf16.xpose.msra.mxu0 0
      %294 = vmatpush.bf16.xpose.msra.mxu0 0
      %295 = vmatpush.bf16.xpose.msra.mxu0 0
      %296 = vmatpush.bf16.xpose.msra.mxu0 0
      %297 = vmatpush.bf16.xpose.msra.mxu0 0
      %298 = vmatpush.bf16.xpose.msra.mxu0 0
      %299 = vmatpush.bf16.xpose.msra.mxu0 0
      %300 = vmatpush.bf16.xpose.msra.mxu0 %v291
      %301 = vmatmul.bf16.gmra.mxu0 %v288
      %v302 = vpop.f32.mrf.mxu0
      %v303 = vadd.f32 0.0, %v302
      %v304 = vpop.f32.mrf.mxu0
      %305 = vdwg.mxu0
      %v306 = vld [vmem:[#allocation2] sm:$0xff]
      %v307 = vld [vmem:[#allocation3] sm:$0xff]
      %v308 = vsel %vm286, %v303, -inf
      %309 = vmax.xlane.f32.xlu0 %v308
      %v310 = vpop.xlane.xlu0 %309
      %v311 = vmax.f32 %v306, %v310
      %v312 = vsub.f32 %v306, %v311
      %v313 = vmul.f32 %v312, 1.442695
      %v314 = vpow.pop %v313
      %316 = vset.pattern.permute.xlu0 0
      %317 = vperm.xlu0 %316, %v311
      %v318 = vpop.permute.xlu0 %317
      %v320 = vsub.f32 %v303, %v318
      %v321 = vmul.f32 %v320, 1.442695
      %v322 = vpow.pop %v321
      %v323 = vmul.f32 %v314, %v307
      %v324 = vsel %vm286, %v322, 0.0
      %325 = vadd.xlane.f32.xlu0 %v324
      %v326 = vpop.xlane.xlu0 %325
      %v327 = vadd.f32 %v323, %v326
      %328 = vst [vmem:[#allocation3] sm:$0xff] %v327
      %329 = vst [vmem:[#allocation2] sm:$0xff] %v311
      %v330 = vpack.c.bf16 %v322, %v322
      %v331 = vld [vmem:[%s258] sm:$0xf]
      %v333 = vsel %vm286, %v330, 0
      %vm335 = vcmask 1043456
      %v337 = vsel %vm335, %v331, 0
      %339 = vmatpush.bf16.msra.mxu0 0
      %340 = vmatpush.bf16.msra.mxu0 0
      %341 = vmatpush.bf16.msra.mxu0 0
      %342 = vmatpush.bf16.msra.mxu0 0
      %343 = vmatpush.bf16.msra.mxu0 0
      %344 = vmatpush.bf16.msra.mxu0 0
      %345 = vmatpush.bf16.msra.mxu0 0
      %346 = vmatpush.bf16.msra.mxu0 %v337
      %347 = vmatmul.bf16.gmra.mxu0 %v333
      %v348 = vpop.f32.mrf.mxu0
      %v349 = vadd.f32 0.0, %v348
      %v350 = vpop.f32.mrf.mxu0
      %351 = vdwg.mxu0
      %v352 = vld [vmem:[#allocation4] sm:$0xff]
      %354 = vset.pattern.permute.xlu0 0
      %355 = vperm.xlu0 %354, %v314
      %v356 = vpop.permute.xlu0 %355
      %v358 = vmul.f32 %v352, %v356
      %v359 = vadd.f32 %v358, %v349
      %360 = vst.msk [vmem:[#allocation4] sm:$0xff] %vm286, %v359
      %v361 = vld [vmem:[%s242] sm:$0xf]
      %v362 = vld [vmem:[%s250] sm:$0xf]
      %v364 = vunpack.c.l.b16 %v361
      %v365 = vpack.c.b16 %v364, %v364
      %366 = vrot.lane.b32.xlu0 %v365, 120
      %v367 = vpop.permute.xlu0 %366
      %v369 = vunpack.c.l.b16 %v362
      %v370 = vpack.c.b16 %v369, %v369
      %371 = vrot.lane.b32.xlu0 %v370, 120
      %v372 = vpop.permute.xlu0 %371
      %v374 = vsel %vm286, %v367, 0
      %v377 = vsel %vm286, %v372, 0
      %379 = vmatpush.bf16.xpose.msra.mxu0 0
      %380 = vmatpush.bf16.xpose.msra.mxu0 0
      %381 = vmatpush.bf16.xpose.msra.mxu0 0
      %382 = vmatpush.bf16.xpose.msra.mxu0 0
      %383 = vmatpush.bf16.xpose.msra.mxu0 0
      %384 = vmatpush.bf16.xpose.msra.mxu0 0
      %385 = vmatpush.bf16.xpose.msra.mxu0 0
      %386 = vmatpush.bf16.xpose.msra.mxu0 %v377
      %387 = vmatmul.bf16.gmra.mxu0 %v374
      %v388 = vpop.f32.mrf.mxu0
      %v389 = vadd.f32 0.0, %v388
      %v390 = vpop.f32.mrf.mxu0
      %391 = vdwg.mxu0
      %s392 = scalar_lea.vmem [#allocation2], 8
      %v393 = vld [vmem:[%s392] sm:$0xff]
      %s394 = scalar_lea.vmem [#allocation3], 8
      %v395 = vld [vmem:[%s394] sm:$0xff]
      %v396 = vsel %vm286, %v389, -inf
      %397 = vmax.xlane.f32.xlu0 %v396
      %v398 = vpop.xlane.xlu0 %397
      %v399 = vmax.f32 %v393, %v398
      %v400 = vsub.f32 %v393, %v399
      %v401 = vmul.f32 %v400, 1.442695
      %v402 = vpow.pop %v401
      %404 = vset.pattern.permute.xlu0 0
      %405 = vperm.xlu0 %404, %v399
      %v406 = vpop.permute.xlu0 %405
      %v408 = vsub.f32 %v389, %v406
      %v409 = vmul.f32 %v408, 1.442695
      %v410 = vpow.pop %v409
      %v411 = vmul.f32 %v402, %v395
      %v412 = vsel %vm286, %v410, 0.0
      %413 = vadd.xlane.f32.xlu0 %v412
      %v414 = vpop.xlane.xlu0 %413
      %v415 = vadd.f32 %v411, %v414
      %416 = vst [vmem:[%s394] sm:$0xff] %v415
      %417 = vst [vmem:[%s392] sm:$0xff] %v399
      %v418 = vpack.c.bf16 %v410, %v410
      %v419 = vld [vmem:[%s258] sm:$0xf]
      %v421 = vunpack.c.l.b16 %v419
      %v422 = vpack.c.b16 %v421, %v421
      %423 = vrot.lane.b32.xlu0 %v422, 120
      %v424 = vpop.permute.xlu0 %423
      %v426 = vsel %vm286, %v418, 0
      %v429 = vsel %vm335, %v424, 0
      %431 = vmatpush.bf16.msra.mxu0 0
      %432 = vmatpush.bf16.msra.mxu0 0
      %433 = vmatpush.bf16.msra.mxu0 0
      %434 = vmatpush.bf16.msra.mxu0 0
      %435 = vmatpush.bf16.msra.mxu0 0
      %436 = vmatpush.bf16.msra.mxu0 0
      %437 = vmatpush.bf16.msra.mxu0 0
      %438 = vmatpush.bf16.msra.mxu0 %v429
      %439 = vmatmul.bf16.gmra.mxu0 %v426
      %v440 = vpop.f32.mrf.mxu0
      %v441 = vadd.f32 0.0, %v440
      %v442 = vpop.f32.mrf.mxu0
      %443 = vdwg.mxu0
      %s444 = scalar_lea.vmem [#allocation4], 8
      %v445 = vld [vmem:[%s444] sm:$0xff]
      %447 = vset.pattern.permute.xlu0 0
      %448 = vperm.xlu0 %447, %v402
      %v449 = vpop.permute.xlu0 %448
      %v451 = vmul.f32 %v445, %v449
      %v452 = vadd.f32 %v451, %v441
      %453 = vst.msk [vmem:[%s444] sm:$0xff] %vm286, %v452
      %v454 = vld [vmem:[%s242] sm:$0xf]
      %v455 = vld [vmem:[%s250] sm:$0xf]
      %v457 = vunpack.c.l.b16 %v454
      %v458 = vpack.c.b16 %v457, %v457
      %459 = vrot.lane.b32.xlu0 %v458, 112
      %v460 = vpop.permute.xlu0 %459
      %v462 = vunpack.c.l.b16 %v455
      %v463 = vpack.c.b16 %v462, %v462
      %464 = vrot.lane.b32.xlu0 %v463, 112
      %v465 = vpop.permute.xlu0 %464
      %v467 = vsel %vm286, %v460, 0
      %v470 = vsel %vm286, %v465, 0
      %472 = vmatpush.bf16.xpose.msra.mxu0 0
      %473 = vmatpush.bf16.xpose.msra.mxu0 0
      %474 = vmatpush.bf16.xpose.msra.mxu0 0
      %475 = vmatpush.bf16.xpose.msra.mxu0 0
      %476 = vmatpush.bf16.xpose.msra.mxu0 0
      %477 = vmatpush.bf16.xpose.msra.mxu0 0
      %478 = vmatpush.bf16.xpose.msra.mxu0 0
      %479 = vmatpush.bf16.xpose.msra.mxu0 %v470
      %480 = vmatmul.bf16.gmra.mxu0 %v467
      %v481 = vpop.f32.mrf.mxu0
      %v482 = vadd.f32 0.0, %v481
      %v483 = vpop.f32.mrf.mxu0
      %484 = vdwg.mxu0
      %s485 = scalar_lea.vmem [#allocation2], 16
      %v486 = vld [vmem:[%s485] sm:$0xff]
      %s487 = scalar_lea.vmem [#allocation3], 16
      %v488 = vld [vmem:[%s487] sm:$0xff]
      %v489 = vsel %vm286, %v482, -inf
      %490 = vmax.xlane.f32.xlu0 %v489
      %v491 = vpop.xlane.xlu0 %490
      %v492 = vmax.f32 %v486, %v491
      %v493 = vsub.f32 %v486, %v492
      %v494 = vmul.f32 %v493, 1.442695
      %v495 = vpow.pop %v494
      %497 = vset.pattern.permute.xlu0 0
      %498 = vperm.xlu0 %497, %v492
      %v499 = vpop.permute.xlu0 %498
      %v501 = vsub.f32 %v482, %v499
      %v502 = vmul.f32 %v501, 1.442695
      %v503 = vpow.pop %v502
      %v504 = vmul.f32 %v495, %v488
      %v505 = vsel %vm286, %v503, 0.0
      %506 = vadd.xlane.f32.xlu0 %v505
      %v507 = vpop.xlane.xlu0 %506
      %v508 = vadd.f32 %v504, %v507
      %509 = vst [vmem:[%s487] sm:$0xff] %v508
      %510 = vst [vmem:[%s485] sm:$0xff] %v492
      %v511 = vpack.c.bf16 %v503, %v503
      %v512 = vld [vmem:[%s258] sm:$0xf]
      %v514 = vunpack.c.l.b16 %v512
      %v515 = vpack.c.b16 %v514, %v514
      %516 = vrot.lane.b32.xlu0 %v515, 112
      %v517 = vpop.permute.xlu0 %516
      %v519 = vsel %vm286, %v511, 0
      %v522 = vsel %vm335, %v517, 0
      %524 = vmatpush.bf16.msra.mxu0 0
      %525 = vmatpush.bf16.msra.mxu0 0
      %526 = vmatpush.bf16.msra.mxu0 0
      %527 = vmatpush.bf16.msra.mxu0 0
      %528 = vmatpush.bf16.msra.mxu0 0
      %529 = vmatpush.bf16.msra.mxu0 0
      %530 = vmatpush.bf16.msra.mxu0 0
      %531 = vmatpush.bf16.msra.mxu0 %v522
      %532 = vmatmul.bf16.gmra.mxu0 %v519
      %v533 = vpop.f32.mrf.mxu0
      %v534 = vadd.f32 0.0, %v533
      %v535 = vpop.f32.mrf.mxu0
      %536 = vdwg.mxu0
      %s537 = scalar_lea.vmem [#allocation4], 16
      %v538 = vld [vmem:[%s537] sm:$0xff]
      %540 = vset.pattern.permute.xlu0 0
      %541 = vperm.xlu0 %540, %v495
      %v542 = vpop.permute.xlu0 %541
      %v544 = vmul.f32 %v538, %v542
      %v545 = vadd.f32 %v544, %v534
      %546 = vst.msk [vmem:[%s537] sm:$0xff] %vm286, %v545
      %v547 = vld [vmem:[%s242] sm:$0xf]
      %v548 = vld [vmem:[%s250] sm:$0xf]
      %v550 = vunpack.c.l.b16 %v547
      %v551 = vpack.c.b16 %v550, %v550
      %552 = vrot.lane.b32.xlu0 %v551, 104
      %v553 = vpop.permute.xlu0 %552
      %v555 = vunpack.c.l.b16 %v548
      %v556 = vpack.c.b16 %v555, %v555
      %557 = vrot.lane.b32.xlu0 %v556, 104
      %v558 = vpop.permute.xlu0 %557
      %v560 = vsel %vm286, %v553, 0
      %v563 = vsel %vm286, %v558, 0
      %565 = vmatpush.bf16.xpose.msra.mxu0 0
      %566 = vmatpush.bf16.xpose.msra.mxu0 0
      %567 = vmatpush.bf16.xpose.msra.mxu0 0
      %568 = vmatpush.bf16.xpose.msra.mxu0 0
      %569 = vmatpush.bf16.xpose.msra.mxu0 0
      %570 = vmatpush.bf16.xpose.msra.mxu0 0
      %571 = vmatpush.bf16.xpose.msra.mxu0 0
      %572 = vmatpush.bf16.xpose.msra.mxu0 %v563
      %573 = vmatmul.bf16.gmra.mxu0 %v560
      %v574 = vpop.f32.mrf.mxu0
      %v575 = vadd.f32 0.0, %v574
      %v576 = vpop.f32.mrf.mxu0
      %577 = vdwg.mxu0
      %s578 = scalar_lea.vmem [#allocation2], 24
      %v579 = vld [vmem:[%s578] sm:$0xff]
      %s580 = scalar_lea.vmem [#allocation3], 24
      %v581 = vld [vmem:[%s580] sm:$0xff]
      %v582 = vsel %vm286, %v575, -inf
      %583 = vmax.xlane.f32.xlu0 %v582
      %v584 = vpop.xlane.xlu0 %583
      %v585 = vmax.f32 %v579, %v584
      %v586 = vsub.f32 %v579, %v585
      %v587 = vmul.f32 %v586, 1.442695
      %v588 = vpow.pop %v587
      %590 = vset.pattern.permute.xlu0 0
      %591 = vperm.xlu0 %590, %v585
      %v592 = vpop.permute.xlu0 %591
      %v594 = vsub.f32 %v575, %v592
      %v595 = vmul.f32 %v594, 1.442695
      %v596 = vpow.pop %v595
      %v597 = vmul.f32 %v588, %v581
      %v598 = vsel %vm286, %v596, 0.0
      %599 = vadd.xlane.f32.xlu0 %v598
      %v600 = vpop.xlane.xlu0 %599
      %v601 = vadd.f32 %v597, %v600
      %602 = vst [vmem:[%s580] sm:$0xff] %v601
      %603 = vst [vmem:[%s578] sm:$0xff] %v585
      %v604 = vpack.c.bf16 %v596, %v596
      %v605 = vld [vmem:[%s258] sm:$0xf]
      %v607 = vunpack.c.l.b16 %v605
      %v608 = vpack.c.b16 %v607, %v607
      %609 = vrot.lane.b32.xlu0 %v608, 104
      %v610 = vpop.permute.xlu0 %609
      %v612 = vsel %vm286, %v604, 0
      %v615 = vsel %vm335, %v610, 0
      %617 = vmatpush.bf16.msra.mxu0 0
      %618 = vmatpush.bf16.msra.mxu0 0
      %619 = vmatpush.bf16.msra.mxu0 0
      %620 = vmatpush.bf16.msra.mxu0 0
      %621 = vmatpush.bf16.msra.mxu0 0
      %622 = vmatpush.bf16.msra.mxu0 0
      %623 = vmatpush.bf16.msra.mxu0 0
      %624 = vmatpush.bf16.msra.mxu0 %v615
      %625 = vmatmul.bf16.gmra.mxu0 %v612
      %v626 = vpop.f32.mrf.mxu0
      %v627 = vadd.f32 0.0, %v626
      %v628 = vpop.f32.mrf.mxu0
      %629 = vdwg.mxu0
      %s630 = scalar_lea.vmem [#allocation4], 24
      %v631 = vld [vmem:[%s630] sm:$0xff]
      %633 = vset.pattern.permute.xlu0 0
      %634 = vperm.xlu0 %633, %v588
      %v635 = vpop.permute.xlu0 %634
      %v637 = vmul.f32 %v631, %v635
      %v638 = vadd.f32 %v637, %v627
      %639 = vst.msk [vmem:[%s630] sm:$0xff] %vm286, %v638
      // Predicated region
      $region37: #{attention_forward.4} parent=31 // pred_check
        %p640 = pneg %p267
      $region38: #{attention_forward.4} parent=31 // pred_check_branch
        %642 = sbr.rel (%p640) target = $region40
      $region39: #{attention_forward.4} parent=31 // pred_region
        %v643 = vld [vmem:[#allocation3] sm:$0xff]
        %v644 = vrcp.pop %v643
        %v645 = vld [vmem:[#allocation4] sm:$0xff]
        %647 = vset.pattern.permute.xlu0 0
        %648 = vperm.xlu0 %647, %v644
        %v649 = vpop.permute.xlu0 %648
        %v651 = vmul.f32 %v645, %v649
        %v652 = vpack.c.bf16 %v651, %v651
        %vm653 = vcmask 60416
        %654 = vst.msk [vmem:[%s265] sm:$0xf] %vm653, %v652
        %v655 = vld [vmem:[%s394] sm:$0xff]
        %v656 = vrcp.pop %v655
        %v657 = vld [vmem:[%s444] sm:$0xff]
        %659 = vset.pattern.permute.xlu0 0
        %660 = vperm.xlu0 %659, %v656
        %v661 = vpop.permute.xlu0 %660
        %v663 = vmul.f32 %v657, %v661
        %v664 = vpack.c.bf16 %v663, %v663
        %666 = vrot.lane.b32.xlu0 %v664, 8
        %v667 = vpop.permute.xlu0 %666
        %vm669 = vcmask 126016
        %670 = vst.msk [vmem:[%s265] sm:$0xf] %vm669, %v667
        %v671 = vld [vmem:[%s487] sm:$0xff]
        %v672 = vrcp.pop %v671
        %v673 = vld [vmem:[%s537] sm:$0xff]
        %675 = vset.pattern.permute.xlu0 0
        %676 = vperm.xlu0 %675, %v672
        %v677 = vpop.permute.xlu0 %676
        %v679 = vmul.f32 %v673, %v677
        %v680 = vpack.c.bf16 %v679, %v679
        %682 = vrot.lane.b32.xlu0 %v680, 16
        %v683 = vpop.permute.xlu0 %682
        %vm685 = vcmask 191616
        %686 = vst.msk [vmem:[%s265] sm:$0xf] %vm685, %v683
        %v687 = vld [vmem:[%s580] sm:$0xff]
        %v688 = vrcp.pop %v687
        %v689 = vld [vmem:[%s630] sm:$0xff]
        %691 = vset.pattern.permute.xlu0 0
        %692 = vperm.xlu0 %691, %v688
        %v693 = vpop.permute.xlu0 %692
        %v695 = vmul.f32 %v689, %v693
        %v696 = vpack.c.bf16 %v695, %v695
        %698 = vrot.lane.b32.xlu0 %v696, 24
        %v699 = vpop.permute.xlu0 %698
        %vm701 = vcmask 257216
        %702 = vst.msk [vmem:[%s265] sm:$0xf] %vm701, %v699
      $region40: #{attention_forward.4} parent=31 // pred_fallthru
        _
      %p703 = scmp.lt.s32.totalorder %s19, 1
      %s704 = scalar_select %p703, %s19, 1
      %p705 = scmp.lt.s32.totalorder %s20, 0
      %s706 = scalar_select %p705, %s20, 0
      %s707 = sadd.s32 %s706, %s704
      %s708 = smul.addr %s707, 4
      %s709 = scalar_lea.vmem %s3, %s708
      // Predicated region
      $region41: #{attention_forward.4} parent=31 // pred_check
        %p710 = pneg %p137
      $region42: #{attention_forward.4} parent=31 // pred_check_branch
        %712 = sbr.rel (%p710) target = $region44
      $region43: #{attention_forward.4} parent=31 // pred_region
        _
      $region44: #{attention_forward.4} parent=31 // pred_fallthru
        _
    $region32: #{attention_forward.4} parent=5 // pred_fallthru
      _
    %p713 = scmp.le.s32.totalorder 2, %s9
    // Predicated region
    $region45: #{attention_forward.4} parent=5 // pred_check
      %p714 = pneg %p713
    $region46: #{attention_forward.4} parent=5 // pred_check_branch
      %716 = sbr.rel (%p714) target = $region48
    $region47: #{attention_forward.4} parent=5 // pred_region
      %s717 = ssub.s32 %s9, 2
      // Predicated region
      $region49: #{attention_forward.4} parent=47 // pred_check
        %p718 = pneg %p143
      $region50: #{attention_forward.4} parent=47 // pred_check_branch
        %720 = sbr.rel (%p718) target = $region52
      $region51: #{attention_forward.4} parent=47 // pred_region
        %p721 = scmp.lt.s32.totalorder %s22, 1
        %s722 = scalar_select %p721, %s22, 1
        %p723 = scmp.lt.s32.totalorder %s23, 0
        %s724 = scalar_select %p723, %s23, 0
        %s725 = sadd.s32 %s724, %s722
        %s726 = smul.addr %s725, 4
        %s727 = scalar_lea.vmem %s3, %s726
      $region52: #{attention_forward.4} parent=47 // pred_fallthru
        _
    $region48: #{attention_forward.4} parent=5 // pred_fallthru
      _
  $region6: #{attention_forward.4} parent=0 // loop_footer
    %s13 = sadd.s32 1, %s9
  $region7: #{attention_forward.4} parent=0 // loop_footer_branch
    %8 = sbr.rel target = $region3
  $region8: #{attention_forward.4} parent=0 // loop_exit
    _

</llo_original>
